<compile_context>
chip_gen: v7x
topology: tpu7x:2x2x1
jax: 0.10.0
libtpu: 0.0.40
codegen_flags: <defaults>
</compile_context>

<pallas_src>
import math

import jax
import jax.numpy as jnp
from jax import lax
from jax.experimental import pallas as pl
from jax.experimental.pallas import tpu as pltpu

# ---- small synthetic config (consistent with the module's forward) ----
B, S, H = 2, 8, 32            # batch, seq_len, hidden_size
NHEADS, DHEAD = 2, 16         # H = NHEADS * DHEAD
FFN = 64
VOCAB, NSEG = 100, 2
NUM_CLASSES = 4
PAD_CLASSES = 128             # lane-dense classifier output; sliced to NUM_CLASSES outside
PAD_ROWS = 8                  # sublane-aligned output tile
DR_RATE = 0.5                 # dropout is identity in eval/inference mode


# ---------------- fused Pallas kernel (one batch element per grid step) ----------------

def _layernorm(x, g, b, eps=1e-12):
    mu = jnp.mean(x, axis=-1, keepdims=True)
    var = jnp.mean((x - mu) ** 2, axis=-1, keepdims=True)
    return (x - mu) * lax.rsqrt(var + eps) * g + b


def _fused_bert_kernel(
    vlen_ref,                      # SMEM scalar prefetch: (B,) int32
    x_emb_ref,                     # (S, H)   embedded tokens for this batch element
    ln_emb_g_ref, ln_emb_b_ref,    # (1, H)
    wqkv_ref, bqkv_ref,            # (H, 3H), (1, 3H)   fused QKV projection
    wo_ref, bo_ref,                # (H, H),  (1, H)
    ln1_g_ref, ln1_b_ref,          # (1, H)
    w1_ref, b1_ref,                # (H, FFN), (1, FFN)
    w2_ref, b2_ref,                # (FFN, H), (1, H)
    ln2_g_ref, ln2_b_ref,          # (1, H)
    wp_ref, bp_ref,                # (H, H),  (1, H)    pooler
    wc_ref, bc_ref,                # (H, 128), (1, 128) classifier (lane-padded)
    out_ref,                       # (PAD_ROWS, 128)
):
    b = pl.program_id(0)
    vlen = vlen_ref[b]

    # additive attention mask built in-kernel from valid_length (masks key positions)
    pos = lax.broadcasted_iota(jnp.int32, (1, S), 1)
    neg = jnp.where(pos < vlen, 0.0, -1e9).astype(jnp.float32)              # (1, S)

    # embeddings LayerNorm
    x = _layernorm(x_emb_ref[...], ln_emb_g_ref[...], ln_emb_b_ref[...])    # (S, H)

    # fused QKV projection: one MXU pass with N = 3H
    qkv = jnp.dot(x, wqkv_ref[...], preferred_element_type=jnp.float32) + bqkv_ref[...]
    q, k, v = qkv[:, :H], qkv[:, H:2 * H], qkv[:, 2 * H:]

    # multi-head self-attention; heads folded back into lanes -> lane-dense (S, H)
    scale = 1.0 / math.sqrt(DHEAD)
    head_outs = []
    for h in range(NHEADS):
        sl = slice(h * DHEAD, (h + 1) * DHEAD)
        qh, kh, vh = q[:, sl], k[:, sl], v[:, sl]
        # contract last dims of both operands directly (no transpose through the XLU)
        sc = lax.dot_general(qh, kh, (((1,), (1,)), ((), ())),
                             preferred_element_type=jnp.float32) * scale    # (S, S)
        sc = sc + neg
        m = jnp.max(sc, axis=-1, keepdims=True)
        p = jnp.exp(sc - m)
        p = p * pl.reciprocal(jnp.sum(p, axis=-1, keepdims=True), approx=True)
        head_outs.append(jnp.dot(p, vh, preferred_element_type=jnp.float32))
    attn = jnp.concatenate(head_outs, axis=-1)                              # (S, H)

    attn = jnp.dot(attn, wo_ref[...], preferred_element_type=jnp.float32) + bo_ref[...]
    x = _layernorm(x + attn, ln1_g_ref[...], ln1_b_ref[...])

    # FFN
    # TODO(synk): PyTorch nn.GELU defaults to the exact erf form; tanh approximation used here.
    h1 = jax.nn.gelu(
        jnp.dot(x, w1_ref[...], preferred_element_type=jnp.float32) + b1_ref[...],
        approximate=True)
    h2 = jnp.dot(h1, w2_ref[...], preferred_element_type=jnp.float32) + b2_ref[...]
    x = _layernorm(x + h2, ln2_g_ref[...], ln2_b_ref[...])

    # BERT pooler: tanh(W_p @ hidden[:, 0] + b_p)
    cls = x[0:1, :]                                                         # (1, H)
    pooler = jnp.tanh(
        jnp.dot(cls, wp_ref[...], preferred_element_type=jnp.float32) + bp_ref[...])

    # dropout: identity at inference time
    # TODO(synk): training-mode dropout (p=dr_rate) not implemented; eval semantics only.

    # classifier, lane-padded to 128; broadcast to a full (8,128) tile for a dense store
    logits = jnp.dot(pooler, wc_ref[...], preferred_element_type=jnp.float32) + bc_ref[...]
    out_ref[...] = jnp.broadcast_to(logits, (PAD_ROWS, PAD_CLASSES))


# ---------------- parameters (deterministic, synthetic) ----------------

def init_params(key):
    ks = list(jax.random.split(key, 16))
    n = lambda k, shape: (0.02 * jax.random.normal(k, shape)).astype(jnp.float32)
    z = lambda shape: jnp.zeros(shape, jnp.float32)
    o = lambda shape: jnp.ones(shape, jnp.float32)
    return dict(
        tok_emb=n(ks[0], (VOCAB, H)), seg_emb=n(ks[1], (NSEG, H)), pos_emb=n(ks[2], (S, H)),
        ln_emb_g=o((H,)), ln_emb_b=z((H,)),
        wq=n(ks[3], (H, H)), bq=z((H,)),
        wk=n(ks[4], (H, H)), bk=z((H,)),
        wv=n(ks[5], (H, H)), bv=z((H,)),
        wo=n(ks[6], (H, H)), bo=z((H,)),
        ln1_g=o((H,)), ln1_b=z((H,)),
        w1=n(ks[7], (H, FFN)), b1=z((FFN,)),
        w2=n(ks[8], (FFN, H)), b2=z((H,)),
        ln2_g=o((H,)), ln2_b=z((H,)),
        wp=n(ks[9], (H, H)), bp=z((H,)),
        wc=n(ks[10], (H, NUM_CLASSES)), bc=z((NUM_CLASSES,)),
    )


# ---------------- forward (mirrors BERTClassifier.forward) ----------------

def bert_classifier_forward(params, token_ids, valid_length, segment_ids):
    # embedding gathers are plain-JAX glue; everything downstream runs in one Pallas kernel
    x_emb = (params["tok_emb"][token_ids]
             + params["seg_emb"][segment_ids]                      # token_type_ids.long()
             + params["pos_emb"][None, :, :]).astype(jnp.float32)  # (B, S, H)

    # fused QKV weight / bias
    wqkv = jnp.concatenate([params["wq"], params["wk"], params["wv"]], axis=1)       # (H, 3H)
    bqkv = jnp.concatenate([params["bq"], params["bk"], params["bv"]]).reshape(1, 3 * H)

    # classifier padded to 128 lanes (sliced back to NUM_CLASSES after the call)
    wc_pad = jnp.zeros((H, PAD_CLASSES), jnp.float32).at[:, :NUM_CLASSES].set(params["wc"])
    bc_pad = jnp.zeros((1, PAD_CLASSES), jnp.float32).at[0, :NUM_CLASSES].set(params["bc"])

    row = lambda a: a.reshape(1, -1)

    def full(shape):
        # whole-array block, identical for every grid step (no re-DMA between steps)
        return pl.BlockSpec(shape, lambda b, vlen, _n=len(shape): (0,) * _n)

    in_specs = [
        pl.BlockSpec((None, S, H), lambda b, vlen: (b, 0, 0)),   # x_emb: one batch row per step
        full((1, H)), full((1, H)),                              # ln_emb g/b
        full((H, 3 * H)), full((1, 3 * H)),                      # wqkv / bqkv
        full((H, H)), full((1, H)),                              # wo / bo
        full((1, H)), full((1, H)),                              # ln1 g/b
        full((H, FFN)), full((1, FFN)),                          # w1 / b1
        full((FFN, H)), full((1, H)),                            # w2 / b2
        full((1, H)), full((1, H)),                              # ln2 g/b
        full((H, H)), full((1, H)),                              # wp / bp
        full((H, PAD_CLASSES)), full((1, PAD_CLASSES)),          # wc / bc (padded)
    ]

    logits_pad = pl.pallas_call(
        _fused_bert_kernel,
        out_shape=jax.ShapeDtypeStruct((B, PAD_ROWS, PAD_CLASSES), jnp.float32),
        grid_spec=pltpu.PrefetchScalarGridSpec(
            num_scalar_prefetch=1,                # valid_length -> SMEM
            grid=(B,),
            in_specs=in_specs,
            out_specs=pl.BlockSpec((None, PAD_ROWS, PAD_CLASSES),
                                   lambda b, vlen: (b, 0, 0)),
        ),
        compiler_params=pltpu.CompilerParams(
            dimension_semantics=("parallel",)),   # batch axis -> both TCs on v7x
    )(valid_length.astype(jnp.int32),
      x_emb,
      row(params["ln_emb_g"]), row(params["ln_emb_b"]),
      wqkv, bqkv,
      params["wo"], row(params["bo"]),
      row(params["ln1_g"]), row(params["ln1_b"]),
      params["w1"], row(params["b1"]),
      params["w2"], row(params["b2"]),
      row(params["ln2_g"]), row(params["ln2_b"]),
      params["wp"], row(params["bp"]),
      wc_pad, bc_pad)

    return logits_pad[:, 0, :NUM_CLASSES]                          # (B, NUM_CLASSES)


if __name__ == "__main__":
    key = jax.random.PRNGKey(0)
    kp, kt, ks_ = jax.random.split(key, 3)
    params = init_params(kp)

    token_ids = jax.random.randint(kt, (B, S), 0, VOCAB, dtype=jnp.int32)
    segment_ids = jax.random.randint(ks_, (B, S), 0, NSEG, dtype=jnp.int32)
    valid_length = jnp.array([5, 8], dtype=jnp.int32)

    logits = jax.jit(bert_classifier_forward)(params, token_ids, valid_length, segment_ids)
    jax.block_until_ready(logits)
    assert logits.shape == (B, NUM_CLASSES) and logits.dtype == jnp.float32
    print("KERNEL_OK")
</pallas_src>

<mosaic_0001>
module attributes {stable_mosaic.version = 11 : i64} {
  func.func @_fused_bert_kernel(%arg0: i32, %arg1: memref<2xi32, #tpu.memory_space<smem>>, %arg2: memref<1x8x32xf32, #tpu.memory_space<vmem>>, %arg3: memref<1x32xf32, #tpu.memory_space<vmem>>, %arg4: memref<1x32xf32, #tpu.memory_space<vmem>>, %arg5: memref<32x96xf32, #tpu.memory_space<vmem>>, %arg6: memref<1x96xf32, #tpu.memory_space<vmem>>, %arg7: memref<32x32xf32, #tpu.memory_space<vmem>>, %arg8: memref<1x32xf32, #tpu.memory_space<vmem>>, %arg9: memref<1x32xf32, #tpu.memory_space<vmem>>, %arg10: memref<1x32xf32, #tpu.memory_space<vmem>>, %arg11: memref<32x64xf32, #tpu.memory_space<vmem>>, %arg12: memref<1x64xf32, #tpu.memory_space<vmem>>, %arg13: memref<64x32xf32, #tpu.memory_space<vmem>>, %arg14: memref<1x32xf32, #tpu.memory_space<vmem>>, %arg15: memref<1x32xf32, #tpu.memory_space<vmem>>, %arg16: memref<1x32xf32, #tpu.memory_space<vmem>>, %arg17: memref<32x32xf32, #tpu.memory_space<vmem>>, %arg18: memref<1x32xf32, #tpu.memory_space<vmem>>, %arg19: memref<32x128xf32, #tpu.memory_space<vmem>>, %arg20: memref<1x128xf32, #tpu.memory_space<vmem>>, %arg21: memref<1x8x128xf32, #tpu.memory_space<vmem>>) attributes {dimension_semantics = [#tpu.dimension_semantics<parallel>], iteration_bounds = array<i64: 2>, scalar_prefetch = 1 : i64, scratch_operands = 0 : i64, tpu.core_type = #tpu.core_type<tc>, window_params = [{transform_indices = @transform_0, window_bounds = array<i64: 1, 8, 32>}, {pipeline_mode = #tpu.pipeline_mode<synchronous>, transform_indices = @transform_1, window_bounds = array<i64: 1, 32>}, {pipeline_mode = #tpu.pipeline_mode<synchronous>, transform_indices = @transform_2, window_bounds = array<i64: 1, 32>}, {pipeline_mode = #tpu.pipeline_mode<synchronous>, transform_indices = @transform_3, window_bounds = array<i64: 32, 96>}, {pipeline_mode = #tpu.pipeline_mode<synchronous>, transform_indices = @transform_4, window_bounds = array<i64: 1, 96>}, {pipeline_mode = #tpu.pipeline_mode<synchronous>, transform_indices = @transform_5, window_bounds = array<i64: 32, 32>}, {pipeline_mode = #tpu.pipeline_mode<synchronous>, transform_indices = @transform_6, window_bounds = array<i64: 1, 32>}, {pipeline_mode = #tpu.pipeline_mode<synchronous>, transform_indices = @transform_7, window_bounds = array<i64: 1, 32>}, {pipeline_mode = #tpu.pipeline_mode<synchronous>, transform_indices = @transform_8, window_bounds = array<i64: 1, 32>}, {pipeline_mode = #tpu.pipeline_mode<synchronous>, transform_indices = @transform_9, window_bounds = array<i64: 32, 64>}, {pipeline_mode = #tpu.pipeline_mode<synchronous>, transform_indices = @transform_10, window_bounds = array<i64: 1, 64>}, {pipeline_mode = #tpu.pipeline_mode<synchronous>, transform_indices = @transform_11, window_bounds = array<i64: 64, 32>}, {pipeline_mode = #tpu.pipeline_mode<synchronous>, transform_indices = @transform_12, window_bounds = array<i64: 1, 32>}, {pipeline_mode = #tpu.pipeline_mode<synchronous>, transform_indices = @transform_13, window_bounds = array<i64: 1, 32>}, {pipeline_mode = #tpu.pipeline_mode<synchronous>, transform_indices = @transform_14, window_bounds = array<i64: 1, 32>}, {pipeline_mode = #tpu.pipeline_mode<synchronous>, transform_indices = @transform_15, window_bounds = array<i64: 32, 32>}, {pipeline_mode = #tpu.pipeline_mode<synchronous>, transform_indices = @transform_16, window_bounds = array<i64: 1, 32>}, {pipeline_mode = #tpu.pipeline_mode<synchronous>, transform_indices = @transform_17, window_bounds = array<i64: 32, 128>}, {pipeline_mode = #tpu.pipeline_mode<synchronous>, transform_indices = @transform_18, window_bounds = array<i64: 1, 128>}, {transform_indices = @transform_19, window_bounds = array<i64: 1, 8, 128>}]} {
    %0 = arith.index_cast %arg0 : i32 to index
    %1 = memref.load %arg1[%0] : memref<2xi32, #tpu.memory_space<smem>>
    %2 = tpu.iota {dimensions = array<i32: 1>} : vector<1x8xi32>
    %3 = vector.broadcast %1 : i32 to vector<1x8xi32>
    %4 = arith.cmpi slt, %2, %3 : vector<1x8xi32>
    %cst = arith.constant 0.000000e+00 : f32
    %cst_0 = arith.constant -1.000000e+09 : f32
    %5 = vector.broadcast %cst : f32 to vector<1x8xf32>
    %6 = vector.broadcast %cst_0 : f32 to vector<1x8xf32>
    %7 = arith.select %4, %5, %6 : vector<1x8xi1>, vector<1x8xf32>
    %c0 = arith.constant 0 : index
    %c0_1 = arith.constant 0 : index
    %c0_2 = arith.constant 0 : index
    %8 = vector.load %arg2[%c0, %c0_1, %c0_2] : memref<1x8x32xf32, #tpu.memory_space<vmem>>, vector<1x8x32xf32>
    %9 = vector.shape_cast %8 : vector<1x8x32xf32> to vector<8x32xf32>
    %c0_3 = arith.constant 0 : index
    %c0_4 = arith.constant 0 : index
    %10 = vector.load %arg3[%c0_3, %c0_4] : memref<1x32xf32, #tpu.memory_space<vmem>>, vector<1x32xf32>
    %c0_5 = arith.constant 0 : index
    %c0_6 = arith.constant 0 : index
    %11 = vector.load %arg4[%c0_5, %c0_6] : memref<1x32xf32, #tpu.memory_space<vmem>>, vector<1x32xf32>
    %cst_7 = arith.constant dense<0.000000e+00> : vector<8xf32>
    %12 = vector.multi_reduction <add>, %9, %cst_7 [1] : vector<8x32xf32> to vector<8xf32>
    %13 = vector.shape_cast %12 : vector<8xf32> to vector<8x1xf32>
    %cst_8 = arith.constant 3.200000e+01 : f32
    %14 = vector.broadcast %cst_8 : f32 to vector<8x1xf32>
    %15 = arith.divf %13, %14 : vector<8x1xf32>
    %16 = vector.broadcast %15 : vector<8x1xf32> to vector<8x32xf32>
    %17 = arith.subf %9, %16 : vector<8x32xf32>
    %18 = arith.mulf %17, %17 : vector<8x32xf32>
    %cst_9 = arith.constant dense<0.000000e+00> : vector<8xf32>
    %19 = vector.multi_reduction <add>, %18, %cst_9 [1] : vector<8x32xf32> to vector<8xf32>
    %20 = vector.shape_cast %19 : vector<8xf32> to vector<8x1xf32>
    %cst_10 = arith.constant 3.200000e+01 : f32
    %21 = vector.broadcast %cst_10 : f32 to vector<8x1xf32>
    %22 = arith.divf %20, %21 : vector<8x1xf32>
    %23 = vector.broadcast %15 : vector<8x1xf32> to vector<8x32xf32>
    %24 = arith.subf %9, %23 : vector<8x32xf32>
    %cst_11 = arith.constant 9.99999996E-13 : f32
    %25 = vector.broadcast %cst_11 : f32 to vector<8x1xf32>
    %26 = arith.addf %22, %25 : vector<8x1xf32>
    %27 = math.rsqrt %26 : vector<8x1xf32>
    %28 = vector.broadcast %27 : vector<8x1xf32> to vector<8x32xf32>
    %29 = arith.mulf %24, %28 : vector<8x32xf32>
    %30 = vector.broadcast %10 : vector<1x32xf32> to vector<8x32xf32>
    %31 = arith.mulf %29, %30 : vector<8x32xf32>
    %32 = vector.broadcast %11 : vector<1x32xf32> to vector<8x32xf32>
    %33 = arith.addf %31, %32 : vector<8x32xf32>
    %c0_12 = arith.constant 0 : index
    %c0_13 = arith.constant 0 : index
    %34 = vector.load %arg5[%c0_12, %c0_13] : memref<32x96xf32, #tpu.memory_space<vmem>>, vector<32x96xf32>
    %cst_14 = arith.constant dense<0.000000e+00> : vector<8x96xf32>
    %35 = tpu.matmul %33, %34, %cst_14 {dimension_numbers = #tpu.dot_dimension_numbers<[1], [0], [0], [1], [0, 0, 1, 1], [], []>} : vector<8x32xf32>, vector<32x96xf32>, vector<8x96xf32> -> vector<8x96xf32>
    %c0_15 = arith.constant 0 : index
    %c0_16 = arith.constant 0 : index
    %36 = vector.load %arg6[%c0_15, %c0_16] : memref<1x96xf32, #tpu.memory_space<vmem>>, vector<1x96xf32>
    %37 = vector.broadcast %36 : vector<1x96xf32> to vector<8x96xf32>
    %38 = arith.addf %35, %37 : vector<8x96xf32>
    %39 = vector.extract_strided_slice %38 {offsets = [0, 0], sizes = [8, 32], strides = [1, 1]} : vector<8x96xf32> to vector<8x32xf32>
    %40 = vector.extract_strided_slice %38 {offsets = [0, 32], sizes = [8, 32], strides = [1, 1]} : vector<8x96xf32> to vector<8x32xf32>
    %41 = vector.extract_strided_slice %38 {offsets = [0, 64], sizes = [8, 32], strides = [1, 1]} : vector<8x96xf32> to vector<8x32xf32>
    %42 = vector.extract_strided_slice %39 {offsets = [0, 0], sizes = [8, 16], strides = [1, 1]} : vector<8x32xf32> to vector<8x16xf32>
    %43 = vector.extract_strided_slice %40 {offsets = [0, 0], sizes = [8, 16], strides = [1, 1]} : vector<8x32xf32> to vector<8x16xf32>
    %44 = vector.extract_strided_slice %41 {offsets = [0, 0], sizes = [8, 16], strides = [1, 1]} : vector<8x32xf32> to vector<8x16xf32>
    %cst_17 = arith.constant dense<0.000000e+00> : vector<8x8xf32>
    %45 = tpu.matmul %42, %43, %cst_17 {dimension_numbers = #tpu.dot_dimension_numbers<[1], [1], [0], [0], [0, 0, 1, 0], [], []>} : vector<8x16xf32>, vector<8x16xf32>, vector<8x8xf32> -> vector<8x8xf32>
    %cst_18 = arith.constant 2.500000e-01 : f32
    %46 = vector.broadcast %cst_18 : f32 to vector<8x8xf32>
    %47 = arith.mulf %45, %46 : vector<8x8xf32>
    %48 = vector.broadcast %7 : vector<1x8xf32> to vector<8x8xf32>
    %49 = arith.addf %47, %48 : vector<8x8xf32>
    %cst_19 = arith.constant dense<0xFF800000> : vector<8xf32>
    %50 = vector.multi_reduction <maximumf>, %49, %cst_19 [1] : vector<8x8xf32> to vector<8xf32>
    %51 = vector.shape_cast %50 : vector<8xf32> to vector<8x1xf32>
    %52 = vector.broadcast %51 : vector<8x1xf32> to vector<8x8xf32>
    %53 = arith.subf %49, %52 : vector<8x8xf32>
    %54 = math.exp %53 : vector<8x8xf32>
    %cst_20 = arith.constant dense<0.000000e+00> : vector<8xf32>
    %55 = vector.multi_reduction <add>, %54, %cst_20 [1] : vector<8x8xf32> to vector<8xf32>
    %56 = vector.shape_cast %55 : vector<8xf32> to vector<8x1xf32>
    %57 = tpu.reciprocal %56 {approx = true} : vector<8x1xf32> -> vector<8x1xf32>
    %58 = vector.broadcast %57 : vector<8x1xf32> to vector<8x8xf32>
    %59 = arith.mulf %54, %58 : vector<8x8xf32>
    %cst_21 = arith.constant dense<0.000000e+00> : vector<8x16xf32>
    %60 = tpu.matmul %59, %44, %cst_21 {dimension_numbers = #tpu.dot_dimension_numbers<[1], [0], [0], [1], [0, 0, 1, 1], [], []>} : vector<8x8xf32>, vector<8x16xf32>, vector<8x16xf32> -> vector<8x16xf32>
    %61 = vector.extract_strided_slice %39 {offsets = [0, 16], sizes = [8, 16], strides = [1, 1]} : vector<8x32xf32> to vector<8x16xf32>
    %62 = vector.extract_strided_slice %40 {offsets = [0, 16], sizes = [8, 16], strides = [1, 1]} : vector<8x32xf32> to vector<8x16xf32>
    %63 = vector.extract_strided_slice %41 {offsets = [0, 16], sizes = [8, 16], strides = [1, 1]} : vector<8x32xf32> to vector<8x16xf32>
    %cst_22 = arith.constant dense<0.000000e+00> : vector<8x8xf32>
    %64 = tpu.matmul %61, %62, %cst_22 {dimension_numbers = #tpu.dot_dimension_numbers<[1], [1], [0], [0], [0, 0, 1, 0], [], []>} : vector<8x16xf32>, vector<8x16xf32>, vector<8x8xf32> -> vector<8x8xf32>
    %cst_23 = arith.constant 2.500000e-01 : f32
    %65 = vector.broadcast %cst_23 : f32 to vector<8x8xf32>
    %66 = arith.mulf %64, %65 : vector<8x8xf32>
    %67 = vector.broadcast %7 : vector<1x8xf32> to vector<8x8xf32>
    %68 = arith.addf %66, %67 : vector<8x8xf32>
    %cst_24 = arith.constant dense<0xFF800000> : vector<8xf32>
    %69 = vector.multi_reduction <maximumf>, %68, %cst_24 [1] : vector<8x8xf32> to vector<8xf32>
    %70 = vector.shape_cast %69 : vector<8xf32> to vector<8x1xf32>
    %71 = vector.broadcast %70 : vector<8x1xf32> to vector<8x8xf32>
    %72 = arith.subf %68, %71 : vector<8x8xf32>
    %73 = math.exp %72 : vector<8x8xf32>
    %cst_25 = arith.constant dense<0.000000e+00> : vector<8xf32>
    %74 = vector.multi_reduction <add>, %73, %cst_25 [1] : vector<8x8xf32> to vector<8xf32>
    %75 = vector.shape_cast %74 : vector<8xf32> to vector<8x1xf32>
    %76 = tpu.reciprocal %75 {approx = true} : vector<8x1xf32> -> vector<8x1xf32>
    %77 = vector.broadcast %76 : vector<8x1xf32> to vector<8x8xf32>
    %78 = arith.mulf %73, %77 : vector<8x8xf32>
    %cst_26 = arith.constant dense<0.000000e+00> : vector<8x16xf32>
    %79 = tpu.matmul %78, %63, %cst_26 {dimension_numbers = #tpu.dot_dimension_numbers<[1], [0], [0], [1], [0, 0, 1, 1], [], []>} : vector<8x8xf32>, vector<8x16xf32>, vector<8x16xf32> -> vector<8x16xf32>
    %80 = tpu.concatenate %60, %79 in 1 : vector<8x16xf32>, vector<8x16xf32> -> vector<8x32xf32>
    %c0_27 = arith.constant 0 : index
    %c0_28 = arith.constant 0 : index
    %81 = vector.load %arg7[%c0_27, %c0_28] : memref<32x32xf32, #tpu.memory_space<vmem>>, vector<32x32xf32>
    %cst_29 = arith.constant dense<0.000000e+00> : vector<8x32xf32>
    %82 = tpu.matmul %80, %81, %cst_29 {dimension_numbers = #tpu.dot_dimension_numbers<[1], [0], [0], [1], [0, 0, 1, 1], [], []>} : vector<8x32xf32>, vector<32x32xf32>, vector<8x32xf32> -> vector<8x32xf32>
    %c0_30 = arith.constant 0 : index
    %c0_31 = arith.constant 0 : index
    %83 = vector.load %arg8[%c0_30, %c0_31] : memref<1x32xf32, #tpu.memory_space<vmem>>, vector<1x32xf32>
    %84 = vector.broadcast %83 : vector<1x32xf32> to vector<8x32xf32>
    %85 = arith.addf %82, %84 : vector<8x32xf32>
    %86 = arith.addf %33, %85 : vector<8x32xf32>
    %c0_32 = arith.constant 0 : index
    %c0_33 = arith.constant 0 : index
    %87 = vector.load %arg9[%c0_32, %c0_33] : memref<1x32xf32, #tpu.memory_space<vmem>>, vector<1x32xf32>
    %c0_34 = arith.constant 0 : index
    %c0_35 = arith.constant 0 : index
    %88 = vector.load %arg10[%c0_34, %c0_35] : memref<1x32xf32, #tpu.memory_space<vmem>>, vector<1x32xf32>
    %cst_36 = arith.constant dense<0.000000e+00> : vector<8xf32>
    %89 = vector.multi_reduction <add>, %86, %cst_36 [1] : vector<8x32xf32> to vector<8xf32>
    %90 = vector.shape_cast %89 : vector<8xf32> to vector<8x1xf32>
    %cst_37 = arith.constant 3.200000e+01 : f32
    %91 = vector.broadcast %cst_37 : f32 to vector<8x1xf32>
    %92 = arith.divf %90, %91 : vector<8x1xf32>
    %93 = vector.broadcast %92 : vector<8x1xf32> to vector<8x32xf32>
    %94 = arith.subf %86, %93 : vector<8x32xf32>
    %95 = arith.mulf %94, %94 : vector<8x32xf32>
    %cst_38 = arith.constant dense<0.000000e+00> : vector<8xf32>
    %96 = vector.multi_reduction <add>, %95, %cst_38 [1] : vector<8x32xf32> to vector<8xf32>
    %97 = vector.shape_cast %96 : vector<8xf32> to vector<8x1xf32>
    %cst_39 = arith.constant 3.200000e+01 : f32
    %98 = vector.broadcast %cst_39 : f32 to vector<8x1xf32>
    %99 = arith.divf %97, %98 : vector<8x1xf32>
    %100 = vector.broadcast %92 : vector<8x1xf32> to vector<8x32xf32>
    %101 = arith.subf %86, %100 : vector<8x32xf32>
    %cst_40 = arith.constant 9.99999996E-13 : f32
    %102 = vector.broadcast %cst_40 : f32 to vector<8x1xf32>
    %103 = arith.addf %99, %102 : vector<8x1xf32>
    %104 = math.rsqrt %103 : vector<8x1xf32>
    %105 = vector.broadcast %104 : vector<8x1xf32> to vector<8x32xf32>
    %106 = arith.mulf %101, %105 : vector<8x32xf32>
    %107 = vector.broadcast %87 : vector<1x32xf32> to vector<8x32xf32>
    %108 = arith.mulf %106, %107 : vector<8x32xf32>
    %109 = vector.broadcast %88 : vector<1x32xf32> to vector<8x32xf32>
    %110 = arith.addf %108, %109 : vector<8x32xf32>
    %c0_41 = arith.constant 0 : index
    %c0_42 = arith.constant 0 : index
    %111 = vector.load %arg11[%c0_41, %c0_42] : memref<32x64xf32, #tpu.memory_space<vmem>>, vector<32x64xf32>
    %cst_43 = arith.constant dense<0.000000e+00> : vector<8x64xf32>
    %112 = tpu.matmul %110, %111, %cst_43 {dimension_numbers = #tpu.dot_dimension_numbers<[1], [0], [0], [1], [0, 0, 1, 1], [], []>} : vector<8x32xf32>, vector<32x64xf32>, vector<8x64xf32> -> vector<8x64xf32>
    %c0_44 = arith.constant 0 : index
    %c0_45 = arith.constant 0 : index
    %113 = vector.load %arg12[%c0_44, %c0_45] : memref<1x64xf32, #tpu.memory_space<vmem>>, vector<1x64xf32>
    %114 = vector.broadcast %113 : vector<1x64xf32> to vector<8x64xf32>
    %115 = arith.addf %112, %114 : vector<8x64xf32>
    %116 = arith.mulf %115, %115 : vector<8x64xf32>
    %117 = arith.mulf %115, %116 : vector<8x64xf32>
    %cst_46 = arith.constant 4.471500e-02 : f32
    %118 = vector.broadcast %cst_46 : f32 to vector<8x64xf32>
    %119 = arith.mulf %118, %117 : vector<8x64xf32>
    %120 = arith.addf %115, %119 : vector<8x64xf32>
    %cst_47 = arith.constant 0.797884583 : f32
    %121 = vector.broadcast %cst_47 : f32 to vector<8x64xf32>
    %122 = arith.mulf %121, %120 : vector<8x64xf32>
    %123 = math.tanh %122 : vector<8x64xf32>
    %cst_48 = arith.constant 1.000000e+00 : f32
    %124 = vector.broadcast %cst_48 : f32 to vector<8x64xf32>
    %125 = arith.addf %124, %123 : vector<8x64xf32>
    %cst_49 = arith.constant 5.000000e-01 : f32
    %126 = vector.broadcast %cst_49 : f32 to vector<8x64xf32>
    %127 = arith.mulf %126, %125 : vector<8x64xf32>
    %128 = arith.mulf %115, %127 : vector<8x64xf32>
    %c0_50 = arith.constant 0 : index
    %c0_51 = arith.constant 0 : index
    %129 = vector.load %arg13[%c0_50, %c0_51] : memref<64x32xf32, #tpu.memory_space<vmem>>, vector<64x32xf32>
    %cst_52 = arith.constant dense<0.000000e+00> : vector<8x32xf32>
    %130 = tpu.matmul %128, %129, %cst_52 {dimension_numbers = #tpu.dot_dimension_numbers<[1], [0], [0], [1], [0, 0, 1, 1], [], []>} : vector<8x64xf32>, vector<64x32xf32>, vector<8x32xf32> -> vector<8x32xf32>
    %c0_53 = arith.constant 0 : index
    %c0_54 = arith.constant 0 : index
    %131 = vector.load %arg14[%c0_53, %c0_54] : memref<1x32xf32, #tpu.memory_space<vmem>>, vector<1x32xf32>
    %132 = vector.broadcast %131 : vector<1x32xf32> to vector<8x32xf32>
    %133 = arith.addf %130, %132 : vector<8x32xf32>
    %134 = arith.addf %110, %133 : vector<8x32xf32>
    %c0_55 = arith.constant 0 : index
    %c0_56 = arith.constant 0 : index
    %135 = vector.load %arg15[%c0_55, %c0_56] : memref<1x32xf32, #tpu.memory_space<vmem>>, vector<1x32xf32>
    %c0_57 = arith.constant 0 : index
    %c0_58 = arith.constant 0 : index
    %136 = vector.load %arg16[%c0_57, %c0_58] : memref<1x32xf32, #tpu.memory_space<vmem>>, vector<1x32xf32>
    %cst_59 = arith.constant dense<0.000000e+00> : vector<8xf32>
    %137 = vector.multi_reduction <add>, %134, %cst_59 [1] : vector<8x32xf32> to vector<8xf32>
    %138 = vector.shape_cast %137 : vector<8xf32> to vector<8x1xf32>
    %cst_60 = arith.constant 3.200000e+01 : f32
    %139 = vector.broadcast %cst_60 : f32 to vector<8x1xf32>
    %140 = arith.divf %138, %139 : vector<8x1xf32>
    %141 = vector.broadcast %140 : vector<8x1xf32> to vector<8x32xf32>
    %142 = arith.subf %134, %141 : vector<8x32xf32>
    %143 = arith.mulf %142, %142 : vector<8x32xf32>
    %cst_61 = arith.constant dense<0.000000e+00> : vector<8xf32>
    %144 = vector.multi_reduction <add>, %143, %cst_61 [1] : vector<8x32xf32> to vector<8xf32>
    %145 = vector.shape_cast %144 : vector<8xf32> to vector<8x1xf32>
    %cst_62 = arith.constant 3.200000e+01 : f32
    %146 = vector.broadcast %cst_62 : f32 to vector<8x1xf32>
    %147 = arith.divf %145, %146 : vector<8x1xf32>
    %148 = vector.broadcast %140 : vector<8x1xf32> to vector<8x32xf32>
    %149 = arith.subf %134, %148 : vector<8x32xf32>
    %cst_63 = arith.constant 9.99999996E-13 : f32
    %150 = vector.broadcast %cst_63 : f32 to vector<8x1xf32>
    %151 = arith.addf %147, %150 : vector<8x1xf32>
    %152 = math.rsqrt %151 : vector<8x1xf32>
    %153 = vector.broadcast %152 : vector<8x1xf32> to vector<8x32xf32>
    %154 = arith.mulf %149, %153 : vector<8x32xf32>
    %155 = vector.broadcast %135 : vector<1x32xf32> to vector<8x32xf32>
    %156 = arith.mulf %154, %155 : vector<8x32xf32>
    %157 = vector.broadcast %136 : vector<1x32xf32> to vector<8x32xf32>
    %158 = arith.addf %156, %157 : vector<8x32xf32>
    %159 = vector.extract_strided_slice %158 {offsets = [0, 0], sizes = [1, 32], strides = [1, 1]} : vector<8x32xf32> to vector<1x32xf32>
    %c0_64 = arith.constant 0 : index
    %c0_65 = arith.constant 0 : index
    %160 = vector.load %arg17[%c0_64, %c0_65] : memref<32x32xf32, #tpu.memory_space<vmem>>, vector<32x32xf32>
    %cst_66 = arith.constant dense<0.000000e+00> : vector<1x32xf32>
    %161 = tpu.matmul %159, %160, %cst_66 {dimension_numbers = #tpu.dot_dimension_numbers<[1], [0], [0], [1], [0, 0, 1, 1], [], []>} : vector<1x32xf32>, vector<32x32xf32>, vector<1x32xf32> -> vector<1x32xf32>
    %c0_67 = arith.constant 0 : index
    %c0_68 = arith.constant 0 : index
    %162 = vector.load %arg18[%c0_67, %c0_68] : memref<1x32xf32, #tpu.memory_space<vmem>>, vector<1x32xf32>
    %163 = arith.addf %161, %162 : vector<1x32xf32>
    %164 = math.tanh %163 : vector<1x32xf32>
    %c0_69 = arith.constant 0 : index
    %c0_70 = arith.constant 0 : index
    %165 = vector.load %arg19[%c0_69, %c0_70] : memref<32x128xf32, #tpu.memory_space<vmem>>, vector<32x128xf32>
    %cst_71 = arith.constant dense<0.000000e+00> : vector<1x128xf32>
    %166 = tpu.matmul %164, %165, %cst_71 {dimension_numbers = #tpu.dot_dimension_numbers<[1], [0], [0], [1], [0, 0, 1, 1], [], []>} : vector<1x32xf32>, vector<32x128xf32>, vector<1x128xf32> -> vector<1x128xf32>
    %c0_72 = arith.constant 0 : index
    %c0_73 = arith.constant 0 : index
    %167 = vector.load %arg20[%c0_72, %c0_73] : memref<1x128xf32, #tpu.memory_space<vmem>>, vector<1x128xf32>
    %168 = arith.addf %166, %167 : vector<1x128xf32>
    %169 = vector.shape_cast %168 : vector<1x128xf32> to vector<1x128xf32>
    %170 = vector.broadcast %169 : vector<1x128xf32> to vector<8x128xf32>
    %c0_74 = arith.constant 0 : index
    %c0_75 = arith.constant 0 : index
    %c0_76 = arith.constant 0 : index
    %171 = vector.load %arg21[%c0_74, %c0_75, %c0_76] : memref<1x8x128xf32, #tpu.memory_space<vmem>>, vector<1x8x128xf32>
    %172 = vector.shape_cast %171 : vector<1x8x128xf32> to vector<8x128xf32>
    %173 = vector.shape_cast %170 : vector<8x128xf32> to vector<1x8x128xf32>
    tpu.vector_store %arg21[%c0_74, %c0_75, %c0_76], %173 {strides = array<i32>} : memref<1x8x128xf32, #tpu.memory_space<vmem>>, vector<1x8x128xf32>,
    return
  }
  func.func @transform_0(%arg0: i32, %arg1: memref<2xi32, #tpu.memory_space<smem>>) -> (i32, i32, i32) {
    %c0_i32 = arith.constant 0 : i32
    %c0_i32_0 = arith.constant 0 : i32
    %c0_i32_1 = arith.constant 0 : i32
    return %arg0, %c0_i32, %c0_i32_0 : i32, i32, i32
  }
  func.func @transform_1(%arg0: i32, %arg1: memref<2xi32, #tpu.memory_space<smem>>) -> (i32, i32) {
    %c0_i32 = arith.constant 0 : i32
    %c0_i32_0 = arith.constant 0 : i32
    %c0_i32_1 = arith.constant 0 : i32
    return %c0_i32, %c0_i32_0 : i32, i32
  }
  func.func @transform_2(%arg0: i32, %arg1: memref<2xi32, #tpu.memory_space<smem>>) -> (i32, i32) {
    %c0_i32 = arith.constant 0 : i32
    %c0_i32_0 = arith.constant 0 : i32
    %c0_i32_1 = arith.constant 0 : i32
    return %c0_i32, %c0_i32_0 : i32, i32
  }
  func.func @transform_3(%arg0: i32, %arg1: memref<2xi32, #tpu.memory_space<smem>>) -> (i32, i32) {
    %c0_i32 = arith.constant 0 : i32
    %c0_i32_0 = arith.constant 0 : i32
    %c0_i32_1 = arith.constant 0 : i32
    return %c0_i32, %c0_i32_0 : i32, i32
  }
  func.func @transform_4(%arg0: i32, %arg1: memref<2xi32, #tpu.memory_space<smem>>) -> (i32, i32) {
    %c0_i32 = arith.constant 0 : i32
    %c0_i32_0 = arith.constant 0 : i32
    %c0_i32_1 = arith.constant 0 : i32
    return %c0_i32, %c0_i32_0 : i32, i32
  }
  func.func @transform_5(%arg0: i32, %arg1: memref<2xi32, #tpu.memory_space<smem>>) -> (i32, i32) {
    %c0_i32 = arith.constant 0 : i32
    %c0_i32_0 = arith.constant 0 : i32
    %c0_i32_1 = arith.constant 0 : i32
    return %c0_i32, %c0_i32_0 : i32, i32
  }
  func.func @transform_6(%arg0: i32, %arg1: memref<2xi32, #tpu.memory_space<smem>>) -> (i32, i32) {
    %c0_i32 = arith.constant 0 : i32
    %c0_i32_0 = arith.constant 0 : i32
    %c0_i32_1 = arith.constant 0 : i32
    return %c0_i32, %c0_i32_0 : i32, i32
  }
  func.func @transform_7(%arg0: i32, %arg1: memref<2xi32, #tpu.memory_space<smem>>) -> (i32, i32) {
    %c0_i32 = arith.constant 0 : i32
    %c0_i32_0 = arith.constant 0 : i32
    %c0_i32_1 = arith.constant 0 : i32
    return %c0_i32, %c0_i32_0 : i32, i32
  }
  func.func @transform_8(%arg0: i32, %arg1: memref<2xi32, #tpu.memory_space<smem>>) -> (i32, i32) {
    %c0_i32 = arith.constant 0 : i32
    %c0_i32_0 = arith.constant 0 : i32
    %c0_i32_1 = arith.constant 0 : i32
    return %c0_i32, %c0_i32_0 : i32, i32
  }
  func.func @transform_9(%arg0: i32, %arg1: memref<2xi32, #tpu.memory_space<smem>>) -> (i32, i32) {
    %c0_i32 = arith.constant 0 : i32
    %c0_i32_0 = arith.constant 0 : i32
    %c0_i32_1 = arith.constant 0 : i32
    return %c0_i32, %c0_i32_0 : i32, i32
  }
  func.func @transform_10(%arg0: i32, %arg1: memref<2xi32, #tpu.memory_space<smem>>) -> (i32, i32) {
    %c0_i32 = arith.constant 0 : i32
    %c0_i32_0 = arith.constant 0 : i32
    %c0_i32_1 = arith.constant 0 : i32
    return %c0_i32, %c0_i32_0 : i32, i32
  }
  func.func @transform_11(%arg0: i32, %arg1: memref<2xi32, #tpu.memory_space<smem>>) -> (i32, i32) {
    %c0_i32 = arith.constant 0 : i32
    %c0_i32_0 = arith.constant 0 : i32
    %c0_i32_1 = arith.constant 0 : i32
    return %c0_i32, %c0_i32_0 : i32, i32
  }
  func.func @transform_12(%arg0: i32, %arg1: memref<2xi32, #tpu.memory_space<smem>>) -> (i32, i32) {
    %c0_i32 = arith.constant 0 : i32
    %c0_i32_0 = arith.constant 0 : i32
    %c0_i32_1 = arith.constant 0 : i32
    return %c0_i32, %c0_i32_0 : i32, i32
  }
  func.func @transform_13(%arg0: i32, %arg1: memref<2xi32, #tpu.memory_space<smem>>) -> (i32, i32) {
    %c0_i32 = arith.constant 0 : i32
    %c0_i32_0 = arith.constant 0 : i32
    %c0_i32_1 = arith.constant 0 : i32
    return %c0_i32, %c0_i32_0 : i32, i32
  }
  func.func @transform_14(%arg0: i32, %arg1: memref<2xi32, #tpu.memory_space<smem>>) -> (i32, i32) {
    %c0_i32 = arith.constant 0 : i32
    %c0_i32_0 = arith.constant 0 : i32
    %c0_i32_1 = arith.constant 0 : i32
    return %c0_i32, %c0_i32_0 : i32, i32
  }
  func.func @transform_15(%arg0: i32, %arg1: memref<2xi32, #tpu.memory_space<smem>>) -> (i32, i32) {
    %c0_i32 = arith.constant 0 : i32
    %c0_i32_0 = arith.constant 0 : i32
    %c0_i32_1 = arith.constant 0 : i32
    return %c0_i32, %c0_i32_0 : i32, i32
  }
  func.func @transform_16(%arg0: i32, %arg1: memref<2xi32, #tpu.memory_space<smem>>) -> (i32, i32) {
    %c0_i32 = arith.constant 0 : i32
    %c0_i32_0 = arith.constant 0 : i32
    %c0_i32_1 = arith.constant 0 : i32
    return %c0_i32, %c0_i32_0 : i32, i32
  }
  func.func @transform_17(%arg0: i32, %arg1: memref<2xi32, #tpu.memory_space<smem>>) -> (i32, i32) {
    %c0_i32 = arith.constant 0 : i32
    %c0_i32_0 = arith.constant 0 : i32
    %c0_i32_1 = arith.constant 0 : i32
    return %c0_i32, %c0_i32_0 : i32, i32
  }
  func.func @transform_18(%arg0: i32, %arg1: memref<2xi32, #tpu.memory_space<smem>>) -> (i32, i32) {
    %c0_i32 = arith.constant 0 : i32
    %c0_i32_0 = arith.constant 0 : i32
    %c0_i32_1 = arith.constant 0 : i32
    return %c0_i32, %c0_i32_0 : i32, i32
  }
  func.func @transform_19(%arg0: i32, %arg1: memref<2xi32, #tpu.memory_space<smem>>) -> (i32, i32, i32) {
    %c0_i32 = arith.constant 0 : i32
    %c0_i32_0 = arith.constant 0 : i32
    %c0_i32_1 = arith.constant 0 : i32
    return %arg0, %c0_i32, %c0_i32_0 : i32, i32, i32
  }
}

</mosaic_0001>

<llo_original>
// kernel: bert_classifier_forward.1
$region0: #{bert_classifier_forward.1}
  #allocation0 [shape = 'u32[]', space=smem, size = 0x4, offset = 0x4, fixed_abs, tag = 'smem constant byte address 0x4 - core index']
  #allocation1 [shape = 'u32[144,128]{1,0:T(1,128)}', space=vmem, size = 0x12000, scoped, tag = 'internal scratch']
  #allocation2 [shape = 's32[1]{0}', space=sflag, size = 0x4, scoped, tag = 'scoped memory for bert_classifier_forward.1']
  #allocation3 [shape = 'u8[512]{0}', space=smem, size = 0x200, scoped, tag = 'prefetched SMEM operand 0']
  %s0 = inlined_call_operand.vmem [shape: s32[2], index: 0, kind: input, shape index: {}]
  %s1 = inlined_call_operand.vmem [shape: f32[2,8,32], index: 1, kind: input, shape index: {}]
  %s2 = inlined_call_operand.vmem [shape: f32[1,32], index: 2, kind: input, shape index: {}]
  %s3 = inlined_call_operand.vmem [shape: f32[1,32], index: 3, kind: input, shape index: {}]
  %s4 = inlined_call_operand.vmem [shape: f32[32,96], index: 4, kind: input, shape index: {}]
  %s5 = inlined_call_operand.vmem [shape: f32[1,96], index: 5, kind: input, shape index: {}]
  %s6 = inlined_call_operand.vmem [shape: f32[32,32], index: 6, kind: input, shape index: {}]
  %s7 = inlined_call_operand.vmem [shape: f32[1,32], index: 7, kind: input, shape index: {}]
  %s8 = inlined_call_operand.vmem [shape: f32[1,32], index: 8, kind: input, shape index: {}]
  %s9 = inlined_call_operand.vmem [shape: f32[1,32], index: 9, kind: input, shape index: {}]
  %s10 = inlined_call_operand.vmem [shape: f32[32,64], index: 10, kind: input, shape index: {}]
  %s11 = inlined_call_operand.vmem [shape: f32[1,64], index: 11, kind: input, shape index: {}]
  %s12 = inlined_call_operand.vmem [shape: f32[64,32], index: 12, kind: input, shape index: {}]
  %s13 = inlined_call_operand.vmem [shape: f32[1,32], index: 13, kind: input, shape index: {}]
  %s14 = inlined_call_operand.vmem [shape: f32[1,32], index: 14, kind: input, shape index: {}]
  %s15 = inlined_call_operand.vmem [shape: f32[1,32], index: 15, kind: input, shape index: {}]
  %s16 = inlined_call_operand.vmem [shape: f32[32,32], index: 16, kind: input, shape index: {}]
  %s17 = inlined_call_operand.vmem [shape: f32[1,32], index: 17, kind: input, shape index: {}]
  %s18 = inlined_call_operand.vmem [shape: f32[32,128], index: 18, kind: input, shape index: {}]
  %s19 = inlined_call_operand.vmem [shape: f32[1,128], index: 19, kind: input, shape index: {}]
  %s20 = inlined_call_operand.vmem [shape: f32[2,8,128], index: 20, kind: output, shape index: {}]
  %s21 = sld [smem:[#allocation0]]
  $region109: #{bert_classifier_forward.1} parent=0
    _
  %s23 = ssub.s32 1, %s21
  %s24 = scalar_select 0, %s23, %s21
  %s25 = sshll.u32 %s0, 4
  %s26 = int_to_ptr.vmem [resolvable:$true] %s25
  %28 = dma.vmem_to_smem %s26, 16, [#allocation3], [#allocation2]
  %29 = dma.done [#allocation2], 16
  %30 = sfence
  loop: start=0, step=1, limit=4
  $region2: #{bert_classifier_forward.1} parent=0 // loop_pre_header
    _
  $region3: #{bert_classifier_forward.1} parent=0 // loop_header
    %s32 = sphi 0, %s36
    %p33 = scmp.ge.s32.totalorder %s32, 4
    %s42 = sphi 0, %s44
    %s45 = sphi 0, %s42
    %s46 = sphi 0, %s45
    %s62 = sphi 0, %s46
    %s66 = sphi 0, %s66
    %s68 = sphi 0, %s66
    %s69 = sphi 0, %s68
    %s83 = sphi 0, %s69
    %s87 = sphi 0, %s87
    %s89 = sphi 0, %s87
    %s90 = sphi 0, %s89
    %s104 = sphi 0, %s90
    %s108 = sphi 0, %s108
    %s110 = sphi 0, %s108
    %s111 = sphi 0, %s110
    %s125 = sphi 0, %s111
    %s129 = sphi 0, %s129
    %s131 = sphi 0, %s129
    %s132 = sphi 0, %s131
    %s146 = sphi 0, %s132
    %s150 = sphi 0, %s150
    %s152 = sphi 0, %s150
    %s153 = sphi 0, %s152
    %s167 = sphi 0, %s153
    %s171 = sphi 0, %s171
    %s173 = sphi 0, %s171
    %s174 = sphi 0, %s173
    %s188 = sphi 0, %s174
    %s192 = sphi 0, %s192
    %s194 = sphi 0, %s192
    %s195 = sphi 0, %s194
    %s209 = sphi 0, %s195
    %s213 = sphi 0, %s213
    %s215 = sphi 0, %s213
    %s216 = sphi 0, %s215
    %s230 = sphi 0, %s216
    %s234 = sphi 0, %s234
    %s236 = sphi 0, %s234
    %s237 = sphi 0, %s236
    %s251 = sphi 0, %s237
    %s255 = sphi 0, %s255
    %s257 = sphi 0, %s255
    %s258 = sphi 0, %s257
    %s272 = sphi 0, %s258
    %s276 = sphi 0, %s276
    %s278 = sphi 0, %s276
    %s279 = sphi 0, %s278
    %s293 = sphi 0, %s279
    %s297 = sphi 0, %s297
    %s299 = sphi 0, %s297
    %s300 = sphi 0, %s299
    %s314 = sphi 0, %s300
    %s318 = sphi 0, %s318
    %s320 = sphi 0, %s318
    %s321 = sphi 0, %s320
    %s335 = sphi 0, %s321
    %s339 = sphi 0, %s339
    %s341 = sphi 0, %s339
    %s342 = sphi 0, %s341
    %s356 = sphi 0, %s342
    %s360 = sphi 0, %s360
    %s362 = sphi 0, %s360
    %s363 = sphi 0, %s362
    %s377 = sphi 0, %s363
    %s381 = sphi 0, %s381
    %s383 = sphi 0, %s381
    %s384 = sphi 0, %s383
    %s398 = sphi 0, %s384
    %s402 = sphi 0, %s402
    %s404 = sphi 0, %s402
    %s405 = sphi 0, %s404
    %s419 = sphi 0, %s405
    %s423 = sphi 0, %s423
    %s425 = sphi 0, %s423
    %s426 = sphi 0, %s425
    %s440 = sphi 0, %s426
    %s446 = sphi 0, %s448
    %s449 = sphi 0, %s446
    %s450 = sphi 0, %s449
    %s466 = sphi 0, %s450
  $region4: #{bert_classifier_forward.1} parent=0 // loop_header_branch
    %35 = sbr.rel (%p33) target = $region8
  $region5: #{bert_classifier_forward.1} parent=0 // loop_body
    %s37 = ssub.s32 %s32, 1
    %s38 = ssub.s32 %s32, 2
    %s39 = sadd.s32 %s32, 1
    %s40 = ssub.s32 %s32, %s39
    %p41 = scmp.eq.s32.totalorder %s40, 0
    %s43 = sadd.s32 %s42, 1
    %s44 = scalar_select %p41, %s42, %s43
    %p47 = pneg %p41
    %p48 = scmp.eq.s32.totalorder %s32, 1
    %p49 = por %p47, %p48
    %p50 = scmp.ne.s32.totalorder %s42, %s45
    %p51 = scmp.eq.s32.totalorder %s32, 0
    %p52 = por %p50, %p51
    %p53 = scmp.ne.s32.totalorder %s42, %s45
    %p54 = scmp.eq.s32.totalorder %s37, 1
    %p55 = por %p53, %p54
    %p56 = scmp.ne.s32.totalorder %s45, %s46
    %p57 = scmp.eq.s32.totalorder %s37, 0
    %p58 = por %p56, %p57
    %p59 = scmp.ne.s32.totalorder %s45, %s46
    %p60 = scmp.eq.s32.totalorder %s38, 1
    %p61 = por %p59, %p60
    %p63 = scmp.ne.s32.totalorder %s46, %s62
    %p64 = scmp.eq.s32.totalorder %s38, 0
    %p65 = por %p63, %p64
    %s67 = sadd.s32 %s66, 1
    %p70 = scmp.eq.s32.totalorder %s32, 1
    %p71 = scmp.ne.s32.totalorder %s66, %s68
    %p72 = scmp.eq.s32.totalorder %s32, 0
    %p73 = por %p71, %p72
    %p74 = scmp.ne.s32.totalorder %s66, %s68
    %p75 = scmp.eq.s32.totalorder %s37, 1
    %p76 = por %p74, %p75
    %p77 = scmp.ne.s32.totalorder %s68, %s69
    %p78 = scmp.eq.s32.totalorder %s37, 0
    %p79 = por %p77, %p78
    %p80 = scmp.ne.s32.totalorder %s68, %s69
    %p81 = scmp.eq.s32.totalorder %s38, 1
    %p82 = por %p80, %p81
    %p84 = scmp.ne.s32.totalorder %s69, %s83
    %p85 = scmp.eq.s32.totalorder %s38, 0
    %p86 = por %p84, %p85
    %s88 = sadd.s32 %s87, 1
    %p91 = scmp.eq.s32.totalorder %s32, 1
    %p92 = scmp.ne.s32.totalorder %s87, %s89
    %p93 = scmp.eq.s32.totalorder %s32, 0
    %p94 = por %p92, %p93
    %p95 = scmp.ne.s32.totalorder %s87, %s89
    %p96 = scmp.eq.s32.totalorder %s37, 1
    %p97 = por %p95, %p96
    %p98 = scmp.ne.s32.totalorder %s89, %s90
    %p99 = scmp.eq.s32.totalorder %s37, 0
    %p100 = por %p98, %p99
    %p101 = scmp.ne.s32.totalorder %s89, %s90
    %p102 = scmp.eq.s32.totalorder %s38, 1
    %p103 = por %p101, %p102
    %p105 = scmp.ne.s32.totalorder %s90, %s104
    %p106 = scmp.eq.s32.totalorder %s38, 0
    %p107 = por %p105, %p106
    %s109 = sadd.s32 %s108, 1
    %p112 = scmp.eq.s32.totalorder %s32, 1
    %p113 = scmp.ne.s32.totalorder %s108, %s110
    %p114 = scmp.eq.s32.totalorder %s32, 0
    %p115 = por %p113, %p114
    %p116 = scmp.ne.s32.totalorder %s108, %s110
    %p117 = scmp.eq.s32.totalorder %s37, 1
    %p118 = por %p116, %p117
    %p119 = scmp.ne.s32.totalorder %s110, %s111
    %p120 = scmp.eq.s32.totalorder %s37, 0
    %p121 = por %p119, %p120
    %p122 = scmp.ne.s32.totalorder %s110, %s111
    %p123 = scmp.eq.s32.totalorder %s38, 1
    %p124 = por %p122, %p123
    %p126 = scmp.ne.s32.totalorder %s111, %s125
    %p127 = scmp.eq.s32.totalorder %s38, 0
    %p128 = por %p126, %p127
    %s130 = sadd.s32 %s129, 1
    %p133 = scmp.eq.s32.totalorder %s32, 1
    %p134 = scmp.ne.s32.totalorder %s129, %s131
    %p135 = scmp.eq.s32.totalorder %s32, 0
    %p136 = por %p134, %p135
    %p137 = scmp.ne.s32.totalorder %s129, %s131
    %p138 = scmp.eq.s32.totalorder %s37, 1
    %p139 = por %p137, %p138
    %p140 = scmp.ne.s32.totalorder %s131, %s132
    %p141 = scmp.eq.s32.totalorder %s37, 0
    %p142 = por %p140, %p141
    %p143 = scmp.ne.s32.totalorder %s131, %s132
    %p144 = scmp.eq.s32.totalorder %s38, 1
    %p145 = por %p143, %p144
    %p147 = scmp.ne.s32.totalorder %s132, %s146
    %p148 = scmp.eq.s32.totalorder %s38, 0
    %p149 = por %p147, %p148
    %s151 = sadd.s32 %s150, 1
    %p154 = scmp.eq.s32.totalorder %s32, 1
    %p155 = scmp.ne.s32.totalorder %s150, %s152
    %p156 = scmp.eq.s32.totalorder %s32, 0
    %p157 = por %p155, %p156
    %p158 = scmp.ne.s32.totalorder %s150, %s152
    %p159 = scmp.eq.s32.totalorder %s37, 1
    %p160 = por %p158, %p159
    %p161 = scmp.ne.s32.totalorder %s152, %s153
    %p162 = scmp.eq.s32.totalorder %s37, 0
    %p163 = por %p161, %p162
    %p164 = scmp.ne.s32.totalorder %s152, %s153
    %p165 = scmp.eq.s32.totalorder %s38, 1
    %p166 = por %p164, %p165
    %p168 = scmp.ne.s32.totalorder %s153, %s167
    %p169 = scmp.eq.s32.totalorder %s38, 0
    %p170 = por %p168, %p169
    %s172 = sadd.s32 %s171, 1
    %p175 = scmp.eq.s32.totalorder %s32, 1
    %p176 = scmp.ne.s32.totalorder %s171, %s173
    %p177 = scmp.eq.s32.totalorder %s32, 0
    %p178 = por %p176, %p177
    %p179 = scmp.ne.s32.totalorder %s171, %s173
    %p180 = scmp.eq.s32.totalorder %s37, 1
    %p181 = por %p179, %p180
    %p182 = scmp.ne.s32.totalorder %s173, %s174
    %p183 = scmp.eq.s32.totalorder %s37, 0
    %p184 = por %p182, %p183
    %p185 = scmp.ne.s32.totalorder %s173, %s174
    %p186 = scmp.eq.s32.totalorder %s38, 1
    %p187 = por %p185, %p186
    %p189 = scmp.ne.s32.totalorder %s174, %s188
    %p190 = scmp.eq.s32.totalorder %s38, 0
    %p191 = por %p189, %p190
    %s193 = sadd.s32 %s192, 1
    %p196 = scmp.eq.s32.totalorder %s32, 1
    %p197 = scmp.ne.s32.totalorder %s192, %s194
    %p198 = scmp.eq.s32.totalorder %s32, 0
    %p199 = por %p197, %p198
    %p200 = scmp.ne.s32.totalorder %s192, %s194
    %p201 = scmp.eq.s32.totalorder %s37, 1
    %p202 = por %p200, %p201
    %p203 = scmp.ne.s32.totalorder %s194, %s195
    %p204 = scmp.eq.s32.totalorder %s37, 0
    %p205 = por %p203, %p204
    %p206 = scmp.ne.s32.totalorder %s194, %s195
    %p207 = scmp.eq.s32.totalorder %s38, 1
    %p208 = por %p206, %p207
    %p210 = scmp.ne.s32.totalorder %s195, %s209
    %p211 = scmp.eq.s32.totalorder %s38, 0
    %p212 = por %p210, %p211
    %s214 = sadd.s32 %s213, 1
    %p217 = scmp.eq.s32.totalorder %s32, 1
    %p218 = scmp.ne.s32.totalorder %s213, %s215
    %p219 = scmp.eq.s32.totalorder %s32, 0
    %p220 = por %p218, %p219
    %p221 = scmp.ne.s32.totalorder %s213, %s215
    %p222 = scmp.eq.s32.totalorder %s37, 1
    %p223 = por %p221, %p222
    %p224 = scmp.ne.s32.totalorder %s215, %s216
    %p225 = scmp.eq.s32.totalorder %s37, 0
    %p226 = por %p224, %p225
    %p227 = scmp.ne.s32.totalorder %s215, %s216
    %p228 = scmp.eq.s32.totalorder %s38, 1
    %p229 = por %p227, %p228
    %p231 = scmp.ne.s32.totalorder %s216, %s230
    %p232 = scmp.eq.s32.totalorder %s38, 0
    %p233 = por %p231, %p232
    %s235 = sadd.s32 %s234, 1
    %p238 = scmp.eq.s32.totalorder %s32, 1
    %p239 = scmp.ne.s32.totalorder %s234, %s236
    %p240 = scmp.eq.s32.totalorder %s32, 0
    %p241 = por %p239, %p240
    %p242 = scmp.ne.s32.totalorder %s234, %s236
    %p243 = scmp.eq.s32.totalorder %s37, 1
    %p244 = por %p242, %p243
    %p245 = scmp.ne.s32.totalorder %s236, %s237
    %p246 = scmp.eq.s32.totalorder %s37, 0
    %p247 = por %p245, %p246
    %p248 = scmp.ne.s32.totalorder %s236, %s237
    %p249 = scmp.eq.s32.totalorder %s38, 1
    %p250 = por %p248, %p249
    %p252 = scmp.ne.s32.totalorder %s237, %s251
    %p253 = scmp.eq.s32.totalorder %s38, 0
    %p254 = por %p252, %p253
    %s256 = sadd.s32 %s255, 1
    %p259 = scmp.eq.s32.totalorder %s32, 1
    %p260 = scmp.ne.s32.totalorder %s255, %s257
    %p261 = scmp.eq.s32.totalorder %s32, 0
    %p262 = por %p260, %p261
    %p263 = scmp.ne.s32.totalorder %s255, %s257
    %p264 = scmp.eq.s32.totalorder %s37, 1
    %p265 = por %p263, %p264
    %p266 = scmp.ne.s32.totalorder %s257, %s258
    %p267 = scmp.eq.s32.totalorder %s37, 0
    %p268 = por %p266, %p267
    %p269 = scmp.ne.s32.totalorder %s257, %s258
    %p270 = scmp.eq.s32.totalorder %s38, 1
    %p271 = por %p269, %p270
    %p273 = scmp.ne.s32.totalorder %s258, %s272
    %p274 = scmp.eq.s32.totalorder %s38, 0
    %p275 = por %p273, %p274
    %s277 = sadd.s32 %s276, 1
    %p280 = scmp.eq.s32.totalorder %s32, 1
    %p281 = scmp.ne.s32.totalorder %s276, %s278
    %p282 = scmp.eq.s32.totalorder %s32, 0
    %p283 = por %p281, %p282
    %p284 = scmp.ne.s32.totalorder %s276, %s278
    %p285 = scmp.eq.s32.totalorder %s37, 1
    %p286 = por %p284, %p285
    %p287 = scmp.ne.s32.totalorder %s278, %s279
    %p288 = scmp.eq.s32.totalorder %s37, 0
    %p289 = por %p287, %p288
    %p290 = scmp.ne.s32.totalorder %s278, %s279
    %p291 = scmp.eq.s32.totalorder %s38, 1
    %p292 = por %p290, %p291
    %p294 = scmp.ne.s32.totalorder %s279, %s293
    %p295 = scmp.eq.s32.totalorder %s38, 0
    %p296 = por %p294, %p295
    %s298 = sadd.s32 %s297, 1
    %p301 = scmp.eq.s32.totalorder %s32, 1
    %p302 = scmp.ne.s32.totalorder %s297, %s299
    %p303 = scmp.eq.s32.totalorder %s32, 0
    %p304 = por %p302, %p303
    %p305 = scmp.ne.s32.totalorder %s297, %s299
    %p306 = scmp.eq.s32.totalorder %s37, 1
    %p307 = por %p305, %p306
    %p308 = scmp.ne.s32.totalorder %s299, %s300
    %p309 = scmp.eq.s32.totalorder %s37, 0
    %p310 = por %p308, %p309
    %p311 = scmp.ne.s32.totalorder %s299, %s300
    %p312 = scmp.eq.s32.totalorder %s38, 1
    %p313 = por %p311, %p312
    %p315 = scmp.ne.s32.totalorder %s300, %s314
    %p316 = scmp.eq.s32.totalorder %s38, 0
    %p317 = por %p315, %p316
    %s319 = sadd.s32 %s318, 1
    %p322 = scmp.eq.s32.totalorder %s32, 1
    %p323 = scmp.ne.s32.totalorder %s318, %s320
    %p324 = scmp.eq.s32.totalorder %s32, 0
    %p325 = por %p323, %p324
    %p326 = scmp.ne.s32.totalorder %s318, %s320
    %p327 = scmp.eq.s32.totalorder %s37, 1
    %p328 = por %p326, %p327
    %p329 = scmp.ne.s32.totalorder %s320, %s321
    %p330 = scmp.eq.s32.totalorder %s37, 0
    %p331 = por %p329, %p330
    %p332 = scmp.ne.s32.totalorder %s320, %s321
    %p333 = scmp.eq.s32.totalorder %s38, 1
    %p334 = por %p332, %p333
    %p336 = scmp.ne.s32.totalorder %s321, %s335
    %p337 = scmp.eq.s32.totalorder %s38, 0
    %p338 = por %p336, %p337
    %s340 = sadd.s32 %s339, 1
    %p343 = scmp.eq.s32.totalorder %s32, 1
    %p344 = scmp.ne.s32.totalorder %s339, %s341
    %p345 = scmp.eq.s32.totalorder %s32, 0
    %p346 = por %p344, %p345
    %p347 = scmp.ne.s32.totalorder %s339, %s341
    %p348 = scmp.eq.s32.totalorder %s37, 1
    %p349 = por %p347, %p348
    %p350 = scmp.ne.s32.totalorder %s341, %s342
    %p351 = scmp.eq.s32.totalorder %s37, 0
    %p352 = por %p350, %p351
    %p353 = scmp.ne.s32.totalorder %s341, %s342
    %p354 = scmp.eq.s32.totalorder %s38, 1
    %p355 = por %p353, %p354
    %p357 = scmp.ne.s32.totalorder %s342, %s356
    %p358 = scmp.eq.s32.totalorder %s38, 0
    %p359 = por %p357, %p358
    %s361 = sadd.s32 %s360, 1
    %p364 = scmp.eq.s32.totalorder %s32, 1
    %p365 = scmp.ne.s32.totalorder %s360, %s362
    %p366 = scmp.eq.s32.totalorder %s32, 0
    %p367 = por %p365, %p366
    %p368 = scmp.ne.s32.totalorder %s360, %s362
    %p369 = scmp.eq.s32.totalorder %s37, 1
    %p370 = por %p368, %p369
    %p371 = scmp.ne.s32.totalorder %s362, %s363
    %p372 = scmp.eq.s32.totalorder %s37, 0
    %p373 = por %p371, %p372
    %p374 = scmp.ne.s32.totalorder %s362, %s363
    %p375 = scmp.eq.s32.totalorder %s38, 1
    %p376 = por %p374, %p375
    %p378 = scmp.ne.s32.totalorder %s363, %s377
    %p379 = scmp.eq.s32.totalorder %s38, 0
    %p380 = por %p378, %p379
    %s382 = sadd.s32 %s381, 1
    %p385 = scmp.eq.s32.totalorder %s32, 1
    %p386 = scmp.ne.s32.totalorder %s381, %s383
    %p387 = scmp.eq.s32.totalorder %s32, 0
    %p388 = por %p386, %p387
    %p389 = scmp.ne.s32.totalorder %s381, %s383
    %p390 = scmp.eq.s32.totalorder %s37, 1
    %p391 = por %p389, %p390
    %p392 = scmp.ne.s32.totalorder %s383, %s384
    %p393 = scmp.eq.s32.totalorder %s37, 0
    %p394 = por %p392, %p393
    %p395 = scmp.ne.s32.totalorder %s383, %s384
    %p396 = scmp.eq.s32.totalorder %s38, 1
    %p397 = por %p395, %p396
    %p399 = scmp.ne.s32.totalorder %s384, %s398
    %p400 = scmp.eq.s32.totalorder %s38, 0
    %p401 = por %p399, %p400
    %s403 = sadd.s32 %s402, 1
    %p406 = scmp.eq.s32.totalorder %s32, 1
    %p407 = scmp.ne.s32.totalorder %s402, %s404
    %p408 = scmp.eq.s32.totalorder %s32, 0
    %p409 = por %p407, %p408
    %p410 = scmp.ne.s32.totalorder %s402, %s404
    %p411 = scmp.eq.s32.totalorder %s37, 1
    %p412 = por %p410, %p411
    %p413 = scmp.ne.s32.totalorder %s404, %s405
    %p414 = scmp.eq.s32.totalorder %s37, 0
    %p415 = por %p413, %p414
    %p416 = scmp.ne.s32.totalorder %s404, %s405
    %p417 = scmp.eq.s32.totalorder %s38, 1
    %p418 = por %p416, %p417
    %p420 = scmp.ne.s32.totalorder %s405, %s419
    %p421 = scmp.eq.s32.totalorder %s38, 0
    %p422 = por %p420, %p421
    %s424 = sadd.s32 %s423, 1
    %p427 = scmp.eq.s32.totalorder %s32, 1
    %p428 = scmp.ne.s32.totalorder %s423, %s425
    %p429 = scmp.eq.s32.totalorder %s32, 0
    %p430 = por %p428, %p429
    %p431 = scmp.ne.s32.totalorder %s423, %s425
    %p432 = scmp.eq.s32.totalorder %s37, 1
    %p433 = por %p431, %p432
    %p434 = scmp.ne.s32.totalorder %s425, %s426
    %p435 = scmp.eq.s32.totalorder %s37, 0
    %p436 = por %p434, %p435
    %p437 = scmp.ne.s32.totalorder %s425, %s426
    %p438 = scmp.eq.s32.totalorder %s38, 1
    %p439 = por %p437, %p438
    %p441 = scmp.ne.s32.totalorder %s426, %s440
    %p442 = scmp.eq.s32.totalorder %s38, 0
    %p443 = por %p441, %p442
    %s444 = ssub.s32 %s32, %s39
    %p445 = scmp.eq.s32.totalorder %s444, 0
    %s447 = sadd.s32 %s446, 1
    %s448 = scalar_select %p445, %s446, %s447
    %p451 = pneg %p445
    %p452 = scmp.eq.s32.totalorder %s32, 1
    %p453 = por %p451, %p452
    %p454 = scmp.ne.s32.totalorder %s446, %s449
    %p455 = scmp.eq.s32.totalorder %s32, 0
    %p456 = por %p454, %p455
    %p457 = scmp.ne.s32.totalorder %s446, %s449
    %p458 = scmp.eq.s32.totalorder %s37, 1
    %p459 = por %p457, %p458
    %p460 = scmp.ne.s32.totalorder %s449, %s450
    %p461 = scmp.eq.s32.totalorder %s37, 0
    %p462 = por %p460, %p461
    %p463 = scmp.ne.s32.totalorder %s449, %s450
    %p464 = scmp.eq.s32.totalorder %s38, 1
    %p465 = por %p463, %p464
    %p467 = scmp.ne.s32.totalorder %s450, %s466
    %p468 = scmp.eq.s32.totalorder %s38, 0
    %p469 = por %p467, %p468
    %p470 = scmp.le.s32.totalorder 1, %s32
    %p471 = scmp.lt.s32.totalorder %s32, 3
    %p472 = pnand %p470, %p471
    %p473 = pneg %p472
    // Predicated region
    $region9: #{bert_classifier_forward.1} parent=5 // pred_check
      _
    $region10: #{bert_classifier_forward.1} parent=5 // pred_check_branch
      %475 = sbr.rel (%p472) target = $region12
    $region11: #{bert_classifier_forward.1} parent=5 // pred_region
      %s476 = ssub.s32 %s32, 1
      // Predicated region
      $region13: #{bert_classifier_forward.1} parent=11 // pred_check
        %p477 = pneg %p79
      $region14: #{bert_classifier_forward.1} parent=11 // pred_check_branch
        %479 = sbr.rel (%p477) target = $region16
      $region15: #{bert_classifier_forward.1} parent=11 // pred_region
        _
      $region16: #{bert_classifier_forward.1} parent=11 // pred_fallthru
        _
      // Predicated region
      $region17: #{bert_classifier_forward.1} parent=11 // pred_check
        %p480 = pneg %p100
      $region18: #{bert_classifier_forward.1} parent=11 // pred_check_branch
        %482 = sbr.rel (%p480) target = $region20
      $region19: #{bert_classifier_forward.1} parent=11 // pred_region
        _
      $region20: #{bert_classifier_forward.1} parent=11 // pred_fallthru
        _
      // Predicated region
      $region21: #{bert_classifier_forward.1} parent=11 // pred_check
        %p483 = pneg %p121
      $region22: #{bert_classifier_forward.1} parent=11 // pred_check_branch
        %485 = sbr.rel (%p483) target = $region24
      $region23: #{bert_classifier_forward.1} parent=11 // pred_region
        _
      $region24: #{bert_classifier_forward.1} parent=11 // pred_fallthru
        _
      // Predicated region
      $region25: #{bert_classifier_forward.1} parent=11 // pred_check
        %p486 = pneg %p142
      $region26: #{bert_classifier_forward.1} parent=11 // pred_check_branch
        %488 = sbr.rel (%p486) target = $region28
      $region27: #{bert_classifier_forward.1} parent=11 // pred_region
        _
      $region28: #{bert_classifier_forward.1} parent=11 // pred_fallthru
        _
      // Predicated region
      $region29: #{bert_classifier_forward.1} parent=11 // pred_check
        %p489 = pneg %p163
      $region30: #{bert_classifier_forward.1} parent=11 // pred_check_branch
        %491 = sbr.rel (%p489) target = $region32
      $region31: #{bert_classifier_forward.1} parent=11 // pred_region
        _
      $region32: #{bert_classifier_forward.1} parent=11 // pred_fallthru
        _
      // Predicated region
      $region33: #{bert_classifier_forward.1} parent=11 // pred_check
        %p492 = pneg %p184
      $region34: #{bert_classifier_forward.1} parent=11 // pred_check_branch
        %494 = sbr.rel (%p492) target = $region36
      $region35: #{bert_classifier_forward.1} parent=11 // pred_region
        _
      $region36: #{bert_classifier_forward.1} parent=11 // pred_fallthru
        _
      // Predicated region
      $region37: #{bert_classifier_forward.1} parent=11 // pred_check
        %p495 = pneg %p205
      $region38: #{bert_classifier_forward.1} parent=11 // pred_check_branch
        %497 = sbr.rel (%p495) target = $region40
      $region39: #{bert_classifier_forward.1} parent=11 // pred_region
        _
      $region40: #{bert_classifier_forward.1} parent=11 // pred_fallthru
        _
      // Predicated region
      $region41: #{bert_classifier_forward.1} parent=11 // pred_check
        %p498 = pneg %p226
      $region42: #{bert_classifier_forward.1} parent=11 // pred_check_branch
        %500 = sbr.rel (%p498) target = $region44
      $region43: #{bert_classifier_forward.1} parent=11 // pred_region
        _
      $region44: #{bert_classifier_forward.1} parent=11 // pred_fallthru
        _
      // Predicated region
      $region45: #{bert_classifier_forward.1} parent=11 // pred_check
        %p501 = pneg %p247
      $region46: #{bert_classifier_forward.1} parent=11 // pred_check_branch
        %503 = sbr.rel (%p501) target = $region48
      $region47: #{bert_classifier_forward.1} parent=11 // pred_region
        _
      $region48: #{bert_classifier_forward.1} parent=11 // pred_fallthru
        _
      // Predicated region
      $region49: #{bert_classifier_forward.1} parent=11 // pred_check
        %p504 = pneg %p268
      $region50: #{bert_classifier_forward.1} parent=11 // pred_check_branch
        %506 = sbr.rel (%p504) target = $region52
      $region51: #{bert_classifier_forward.1} parent=11 // pred_region
        _
      $region52: #{bert_classifier_forward.1} parent=11 // pred_fallthru
        _
      // Predicated region
      $region53: #{bert_classifier_forward.1} parent=11 // pred_check
        %p507 = pneg %p289
      $region54: #{bert_classifier_forward.1} parent=11 // pred_check_branch
        %509 = sbr.rel (%p507) target = $region56
      $region55: #{bert_classifier_forward.1} parent=11 // pred_region
        _
      $region56: #{bert_classifier_forward.1} parent=11 // pred_fallthru
        _
      // Predicated region
      $region57: #{bert_classifier_forward.1} parent=11 // pred_check
        %p510 = pneg %p310
      $region58: #{bert_classifier_forward.1} parent=11 // pred_check_branch
        %512 = sbr.rel (%p510) target = $region60
      $region59: #{bert_classifier_forward.1} parent=11 // pred_region
        _
      $region60: #{bert_classifier_forward.1} parent=11 // pred_fallthru
        _
      // Predicated region
      $region61: #{bert_classifier_forward.1} parent=11 // pred_check
        %p513 = pneg %p331
      $region62: #{bert_classifier_forward.1} parent=11 // pred_check_branch
        %515 = sbr.rel (%p513) target = $region64
      $region63: #{bert_classifier_forward.1} parent=11 // pred_region
        _
      $region64: #{bert_classifier_forward.1} parent=11 // pred_fallthru
        _
      // Predicated region
      $region65: #{bert_classifier_forward.1} parent=11 // pred_check
        %p516 = pneg %p352
      $region66: #{bert_classifier_forward.1} parent=11 // pred_check_branch
        %518 = sbr.rel (%p516) target = $region68
      $region67: #{bert_classifier_forward.1} parent=11 // pred_region
        _
      $region68: #{bert_classifier_forward.1} parent=11 // pred_fallthru
        _
      // Predicated region
      $region69: #{bert_classifier_forward.1} parent=11 // pred_check
        %p519 = pneg %p373
      $region70: #{bert_classifier_forward.1} parent=11 // pred_check_branch
        %521 = sbr.rel (%p519) target = $region72
      $region71: #{bert_classifier_forward.1} parent=11 // pred_region
        _
      $region72: #{bert_classifier_forward.1} parent=11 // pred_fallthru
        _
      // Predicated region
      $region73: #{bert_classifier_forward.1} parent=11 // pred_check
        %p522 = pneg %p394
      $region74: #{bert_classifier_forward.1} parent=11 // pred_check_branch
        %524 = sbr.rel (%p522) target = $region76
      $region75: #{bert_classifier_forward.1} parent=11 // pred_region
        _
      $region76: #{bert_classifier_forward.1} parent=11 // pred_fallthru
        _
      // Predicated region
      $region77: #{bert_classifier_forward.1} parent=11 // pred_check
        %p525 = pneg %p415
      $region78: #{bert_classifier_forward.1} parent=11 // pred_check_branch
        %527 = sbr.rel (%p525) target = $region80
      $region79: #{bert_classifier_forward.1} parent=11 // pred_region
        _
      $region80: #{bert_classifier_forward.1} parent=11 // pred_fallthru
        _
      // Predicated region
      $region81: #{bert_classifier_forward.1} parent=11 // pred_check
        %p528 = pneg %p436
      $region82: #{bert_classifier_forward.1} parent=11 // pred_check_branch
        %530 = sbr.rel (%p528) target = $region84
      $region83: #{bert_classifier_forward.1} parent=11 // pred_region
        _
      $region84: #{bert_classifier_forward.1} parent=11 // pred_fallthru
        _
    $region12: #{bert_classifier_forward.1} parent=5 // pred_fallthru
      _
    %p531 = scmp.lt.s32.totalorder %s32, 2
    // Predicated region
    $region85: #{bert_classifier_forward.1} parent=5 // pred_check
      %p532 = pneg %p531
    $region86: #{bert_classifier_forward.1} parent=5 // pred_check_branch
      %534 = sbr.rel (%p532) target = $region88
    $region87: #{bert_classifier_forward.1} parent=5 // pred_region
      // Predicated region
      $region89: #{bert_classifier_forward.1} parent=87 // pred_check
        %p535 = pneg %p52
      $region90: #{bert_classifier_forward.1} parent=87 // pred_check_branch
        %537 = sbr.rel (%p535) target = $region92
      $region91: #{bert_classifier_forward.1} parent=87 // pred_region
        %p538 = scmp.lt.s32.totalorder %s32, 1
        %s539 = scalar_select %p538, %s32, 1
        %s540 = smul.addr %s539, 8
        %s541 = scalar_lea.vmem %s1, %s540
      $region92: #{bert_classifier_forward.1} parent=87 // pred_fallthru
        _
    $region88: #{bert_classifier_forward.1} parent=5 // pred_fallthru
      _
    %p542 = scmp.le.s32.totalorder 1, %s32
    %p543 = scmp.lt.s32.totalorder %s32, 3
    %p544 = pnand %p542, %p543
    %p545 = pneg %p544
    // Predicated region
    $region93: #{bert_classifier_forward.1} parent=5 // pred_check
      _
    $region94: #{bert_classifier_forward.1} parent=5 // pred_check_branch
      %547 = sbr.rel (%p544) target = $region96
    $region95: #{bert_classifier_forward.1} parent=5 // pred_region
      %s548 = ssub.s32 %s32, 1
      %p549 = scmp.lt.s32.totalorder %s37, 1
      %s550 = scalar_select %p549, %s37, 1
      %s551 = smul.addr %s550, 8
      %s552 = scalar_lea.vmem %s1, %s551
      %p553 = pneg %p58
      %p554 = pneg %p55
      %p555 = pneg %p79
      %p556 = pneg %p76
      %p557 = pneg %p100
      %p558 = pneg %p97
      %p559 = pneg %p121
      %p560 = pneg %p118
      %p561 = pneg %p142
      %p562 = pneg %p139
      %p563 = pneg %p163
      %p564 = pneg %p160
      %p565 = pneg %p184
      %p566 = pneg %p181
      %p567 = pneg %p205
      %p568 = pneg %p202
      %p569 = pneg %p226
      %p570 = pneg %p223
      %p571 = pneg %p247
      %p572 = pneg %p244
      %p573 = pneg %p268
      %p574 = pneg %p265
      %p575 = pneg %p289
      %p576 = pneg %p286
      %p577 = pneg %p310
      %p578 = pneg %p307
      %p579 = pneg %p331
      %p580 = pneg %p328
      %p581 = pneg %p352
      %p582 = pneg %p349
      %p583 = pneg %p373
      %p584 = pneg %p370
      %p585 = pneg %p394
      %p586 = pneg %p391
      %p587 = pneg %p415
      %p588 = pneg %p412
      %p589 = pneg %p436
      %p590 = pneg %p433
      %p591 = pneg %p462
      %p592 = pneg %p459
      %p593 = scmp.lt.s32.totalorder %s37, 1
      %s594 = scalar_select %p593, %s37, 1
      %s595 = smul.addr %s594, 8
      %s596 = scalar_lea.vmem %s20, %s595
      %p597 = scmp.lt.s32.totalorder %s37, 1
      %s598 = scalar_select %p597, %s37, 1
      %s599 = smul.addr %s598, 8
      %s600 = scalar_lea.vmem %s1, %s599
      %p601 = scmp.lt.s32.totalorder %s37, 1
      %s602 = scalar_select %p601, %s37, 1
      %s603 = smul.addr %s602, 8
      %s604 = scalar_lea.vmem %s20, %s603
      %s605 = sld [smem:[#allocation3 + %s37]]
      %v606 = vlaneseq
      %v607 = vand.u32 %v606, 127
      %v608 = vstv %s605
      %vm609 = vcmp.lt.s32.totalorder %v607, %v608
      %v610 = vsel %vm609, 0.0, -1e+09
      %v611 = vld [vmem:[%s600] sm:$0xff]
      %v612 = vld [vmem:[%s2] sm:$0x1]
      %v613 = vld [vmem:[%s3] sm:$0x1]
      %vm614 = vcmask 261120
      %v615 = vsel %vm614, %v611, 0.0
      %616 = vadd.xlane.f32.xlu0 %v615
      %v617 = vpop.xlane.xlu0 %616
      %v618 = vrcp.pop 32.0
      %v619 = vmul.f32 %v617, %v618
      %v620 = vsub.f32 %v611, %v619
      %v621 = vmul.f32 %v620, %v620
      %v622 = vsel %vm614, %v621, 0.0
      %623 = vadd.xlane.f32.xlu0 %v622
      %v624 = vpop.xlane.xlu0 %623
      %v625 = vmul.f32 %v624, %v618
      %v626 = vadd.f32 %v625, 1e-12
      %v627 = vrsqrt.pop %v626
      %v628 = vmul.f32 %v620, %v627
      %v630 = vlaneseq
      %v631 = vshrl.u32 %v630, 7
      %v632 = vsub.s32 0, %v631
      %v633 = vrot.slane %v612, %v632
      %v635 = vmul.f32 %v628, %v633
      %v637 = vlaneseq
      %v638 = vshrl.u32 %v637, 7
      %v639 = vsub.s32 0, %v638
      %v640 = vrot.slane %v613, %v639
      %v642 = vadd.f32 %v635, %v640
      %v643 = vld [vmem:[%s4] sm:$0xff]
      %v644 = vld [vmem:[%s4 + $0x8] sm:$0xff]
      %v645 = vld [vmem:[%s4 + $0x10] sm:$0xff]
      %v646 = vld [vmem:[%s4 + $0x18] sm:$0xff]
      %v647 = vld [vmem:[%s5] sm:$0x1]
      %v649 = vlaneseq
      %v650 = vshrl.u32 %v649, 7
      %v651 = vsub.s32 0, %v650
      %v652 = vrot.slane %v647, %v651
      %v655 = vsel %vm614, %v642, 0
      %657 = vmatprep.subr.mxu0 0.0
      %658 = vmatpush1.msra.mxu0 %v643
      %659 = vmatprep.subr.mxu0 0.0
      %660 = vmatpush1.msra.mxu0 %v644
      %661 = vmatprep.subr.mxu0 0.0
      %662 = vmatpush1.msra.mxu0 %v645
      %663 = vmatprep.subr.mxu0 0.0
      %664 = vmatpush1.msra.mxu0 %v646
      %665 = vmatprep.subr.mxu0 0.0
      %666 = vmatpush1.msra.mxu0 0.0
      %667 = vmatprep.subr.mxu0 0.0
      %668 = vmatpush1.msra.mxu0 0.0
      %669 = vmatprep.subr.mxu0 0.0
      %670 = vmatpush1.msra.mxu0 0.0
      %671 = vmatprep.subr.mxu0 0.0
      %672 = vmatpush1.msra.mxu0 0.0
      %673 = vmatprep.subr.mxu0 0.0
      %674 = vmatpush1.msra.mxu0 0.0
      %675 = vmatprep.subr.mxu0 0.0
      %676 = vmatpush1.msra.mxu0 0.0
      %677 = vmatprep.subr.mxu0 0.0
      %678 = vmatpush1.msra.mxu0 0.0
      %679 = vmatprep.subr.mxu0 0.0
      %680 = vmatpush1.msra.mxu0 0.0
      %681 = vmatprep.subr.mxu0 0.0
      %682 = vmatpush1.msra.mxu0 0.0
      %683 = vmatprep.subr.mxu0 0.0
      %684 = vmatpush1.msra.mxu0 0.0
      %685 = vmatprep.subr.mxu0 0.0
      %686 = vmatpush1.msra.mxu0 0.0
      %687 = vmatprep.subr.mxu0 0.0
      %688 = vmatpush1.msra.mxu0 0.0
      %689 = vmatprep.subr.mxu0 0.0
      %690 = vmatpush1.msra.mxu0 0.0
      %691 = vmatprep.subr.mxu0 0.0
      %692 = vmatpush1.msra.mxu0 0.0
      %693 = vmatprep.subr.mxu0 0.0
      %694 = vmatpush1.msra.mxu0 0.0
      %695 = vmatprep.subr.mxu0 0.0
      %696 = vmatpush1.msra.mxu0 0.0
      %697 = vmatprep.subr.mxu0 0.0
      %698 = vmatpush1.msra.mxu0 0.0
      %699 = vmatprep.subr.mxu0 0.0
      %700 = vmatpush1.msra.mxu0 0.0
      %701 = vmatprep.subr.mxu0 0.0
      %702 = vmatpush1.msra.mxu0 0.0
      %703 = vmatprep.subr.mxu0 0.0
      %704 = vmatpush1.msra.mxu0 0.0
      %705 = vmatprep.subr.mxu0 0.0
      %706 = vmatpush1.msra.mxu0 0.0
      %707 = vmatprep.subr.mxu0 0.0
      %708 = vmatpush1.msra.mxu0 0.0
      %709 = vmatprep.subr.mxu0 0.0
      %710 = vmatpush1.msra.mxu0 0.0
      %711 = vmatprep.subr.mxu0 0.0
      %712 = vmatpush1.msra.mxu0 0.0
      %713 = vmatprep.subr.mxu0 0.0
      %714 = vmatpush1.msra.mxu0 0.0
      %715 = vmatprep.subr.mxu0 0.0
      %716 = vmatpush1.msra.mxu0 0.0
      %717 = vmatprep.subr.mxu0 0.0
      %718 = vmatpush1.msra.mxu0 0.0
      %719 = vmatprep.subr.mxu0 0.0
      %720 = vmatpush1.msra.mxu0 0.0
      %721 = vmatprep.mubr.f32.mxu0 0.0
      %722 = vmatmul.mubr.f32.gmra.mrb[0].mxu0 %v655
      %v723 = vpop.f32.mrb[0].mxu0
      %v724 = vadd.f32 %v652, %v723
      %v725 = vpop.f32.mrb[0].mxu0
      %726 = vdwg.mxu0
      %728 = vrot.lane.b32.xlu0 %v724, 96
      %v729 = vpop.permute.xlu0 %728
      %vm730 = vcmask 130048
      %v731 = vsel %vm730, %v724, 0
      %v733 = vsel %vm730, %v729, 0
      %735 = vmatprep.subr.mxu0 0.0
      %736 = vmatpush1.xpose.msra.mxu0 %v733
      %737 = vmatprep.subr.mxu0 0.0
      %738 = vmatpush1.xpose.msra.mxu0 0.0
      %739 = vmatprep.subr.mxu0 0.0
      %740 = vmatpush1.xpose.msra.mxu0 0.0
      %741 = vmatprep.subr.mxu0 0.0
      %742 = vmatpush1.xpose.msra.mxu0 0.0
      %743 = vmatprep.subr.mxu0 0.0
      %744 = vmatpush1.xpose.msra.mxu0 0.0
      %745 = vmatprep.subr.mxu0 0.0
      %746 = vmatpush1.xpose.msra.mxu0 0.0
      %747 = vmatprep.subr.mxu0 0.0
      %748 = vmatpush1.xpose.msra.mxu0 0.0
      %749 = vmatprep.subr.mxu0 0.0
      %750 = vmatpush1.xpose.msra.mxu0 0.0
      %751 = vmatprep.subr.mxu0 0.0
      %752 = vmatpush1.xpose.msra.mxu0 0.0
      %753 = vmatprep.subr.mxu0 0.0
      %754 = vmatpush1.xpose.msra.mxu0 0.0
      %755 = vmatprep.subr.mxu0 0.0
      %756 = vmatpush1.xpose.msra.mxu0 0.0
      %757 = vmatprep.subr.mxu0 0.0
      %758 = vmatpush1.xpose.msra.mxu0 0.0
      %759 = vmatprep.subr.mxu0 0.0
      %760 = vmatpush1.xpose.msra.mxu0 0.0
      %761 = vmatprep.subr.mxu0 0.0
      %762 = vmatpush1.xpose.msra.mxu0 0.0
      %763 = vmatprep.subr.mxu0 0.0
      %764 = vmatpush1.xpose.msra.mxu0 0.0
      %765 = vmatprep.subr.mxu0 0.0
      %766 = vmatpush1.xpose.msra.mxu0 0.0
      %767 = vmatprep.subr.mxu0 0.0
      %768 = vmatpush1.xpose.msra.mxu0 0.0
      %769 = vmatprep.subr.mxu0 0.0
      %770 = vmatpush1.xpose.msra.mxu0 0.0
      %771 = vmatprep.subr.mxu0 0.0
      %772 = vmatpush1.xpose.msra.mxu0 0.0
      %773 = vmatprep.subr.mxu0 0.0
      %774 = vmatpush1.xpose.msra.mxu0 0.0
      %775 = vmatprep.subr.mxu0 0.0
      %776 = vmatpush1.xpose.msra.mxu0 0.0
      %777 = vmatprep.subr.mxu0 0.0
      %778 = vmatpush1.xpose.msra.mxu0 0.0
      %779 = vmatprep.subr.mxu0 0.0
      %780 = vmatpush1.xpose.msra.mxu0 0.0
      %781 = vmatprep.subr.mxu0 0.0
      %782 = vmatpush1.xpose.msra.mxu0 0.0
      %783 = vmatprep.subr.mxu0 0.0
      %784 = vmatpush1.xpose.msra.mxu0 0.0
      %785 = vmatprep.subr.mxu0 0.0
      %786 = vmatpush1.xpose.msra.mxu0 0.0
      %787 = vmatprep.subr.mxu0 0.0
      %788 = vmatpush1.xpose.msra.mxu0 0.0
      %789 = vmatprep.subr.mxu0 0.0
      %790 = vmatpush1.xpose.msra.mxu0 0.0
      %791 = vmatprep.subr.mxu0 0.0
      %792 = vmatpush1.xpose.msra.mxu0 0.0
      %793 = vmatprep.subr.mxu0 0.0
      %794 = vmatpush1.xpose.msra.mxu0 0.0
      %795 = vmatprep.subr.mxu0 0.0
      %796 = vmatpush1.xpose.msra.mxu0 0.0
      %797 = vmatprep.subr.mxu0 0.0
      %798 = vmatpush1.xpose.msra.mxu0 0.0
      %799 = vmatprep.mubr.f32.mxu0 0.0
      %800 = vmatmul.mubr.f32.gmra.mrb[0].mxu0 %v731
      %v801 = vpop.f32.mrb[0].mxu0
      %v802 = vadd.f32 0.0, %v801
      %v803 = vpop.f32.mrb[0].mxu0
      %804 = vdwg.mxu0
      %v805 = vmul.f32 %v802, 0.25
      %v806 = vadd.f32 %v805, %v610
      %vm807 = vcmask 64512
      %v808 = vsel %vm807, %v806, -inf
      %809 = vmax.xlane.f32.xlu0 %v808
      %v810 = vpop.xlane.xlu0 %809
      %v811 = vsub.f32 %v806, %v810
      %v812 = vmul.f32 %v811, 1.442695
      %v813 = vpow.pop %v812
      %v814 = vsel %vm807, %v813, 0.0
      %815 = vadd.xlane.f32.xlu0 %v814
      %v816 = vpop.xlane.xlu0 %815
      %v817 = vrcp.pop %v816
      %v818 = vmul.f32 %v813, %v817
      %819 = vrot.lane.b32.xlu0 %v724, 64
      %v820 = vpop.permute.xlu0 %819
      %v823 = vsel %vm807, %v818, 0
      %825 = vmatprep.subr.mxu0 0.0
      %826 = vmatpush1.msra.mxu0 %v820
      %827 = vmatprep.subr.mxu0 0.0
      %828 = vmatpush1.msra.mxu0 0.0
      %829 = vmatprep.subr.mxu0 0.0
      %830 = vmatpush1.msra.mxu0 0.0
      %831 = vmatprep.subr.mxu0 0.0
      %832 = vmatpush1.msra.mxu0 0.0
      %833 = vmatprep.subr.mxu0 0.0
      %834 = vmatpush1.msra.mxu0 0.0
      %835 = vmatprep.subr.mxu0 0.0
      %836 = vmatpush1.msra.mxu0 0.0
      %837 = vmatprep.subr.mxu0 0.0
      %838 = vmatpush1.msra.mxu0 0.0
      %839 = vmatprep.subr.mxu0 0.0
      %840 = vmatpush1.msra.mxu0 0.0
      %841 = vmatprep.subr.mxu0 0.0
      %842 = vmatpush1.msra.mxu0 0.0
      %843 = vmatprep.subr.mxu0 0.0
      %844 = vmatpush1.msra.mxu0 0.0
      %845 = vmatprep.subr.mxu0 0.0
      %846 = vmatpush1.msra.mxu0 0.0
      %847 = vmatprep.subr.mxu0 0.0
      %848 = vmatpush1.msra.mxu0 0.0
      %849 = vmatprep.subr.mxu0 0.0
      %850 = vmatpush1.msra.mxu0 0.0
      %851 = vmatprep.subr.mxu0 0.0
      %852 = vmatpush1.msra.mxu0 0.0
      %853 = vmatprep.subr.mxu0 0.0
      %854 = vmatpush1.msra.mxu0 0.0
      %855 = vmatprep.subr.mxu0 0.0
      %856 = vmatpush1.msra.mxu0 0.0
      %857 = vmatprep.subr.mxu0 0.0
      %858 = vmatpush1.msra.mxu0 0.0
      %859 = vmatprep.subr.mxu0 0.0
      %860 = vmatpush1.msra.mxu0 0.0
      %861 = vmatprep.subr.mxu0 0.0
      %862 = vmatpush1.msra.mxu0 0.0
      %863 = vmatprep.subr.mxu0 0.0
      %864 = vmatpush1.msra.mxu0 0.0
      %865 = vmatprep.subr.mxu0 0.0
      %866 = vmatpush1.msra.mxu0 0.0
      %867 = vmatprep.subr.mxu0 0.0
      %868 = vmatpush1.msra.mxu0 0.0
      %869 = vmatprep.subr.mxu0 0.0
      %870 = vmatpush1.msra.mxu0 0.0
      %871 = vmatprep.subr.mxu0 0.0
      %872 = vmatpush1.msra.mxu0 0.0
      %873 = vmatprep.subr.mxu0 0.0
      %874 = vmatpush1.msra.mxu0 0.0
      %875 = vmatprep.subr.mxu0 0.0
      %876 = vmatpush1.msra.mxu0 0.0
      %877 = vmatprep.subr.mxu0 0.0
      %878 = vmatpush1.msra.mxu0 0.0
      %879 = vmatprep.subr.mxu0 0.0
      %880 = vmatpush1.msra.mxu0 0.0
      %881 = vmatprep.subr.mxu0 0.0
      %882 = vmatpush1.msra.mxu0 0.0
      %883 = vmatprep.subr.mxu0 0.0
      %884 = vmatpush1.msra.mxu0 0.0
      %885 = vmatprep.subr.mxu0 0.0
      %886 = vmatpush1.msra.mxu0 0.0
      %887 = vmatprep.subr.mxu0 0.0
      %888 = vmatpush1.msra.mxu0 0.0
      %889 = vmatprep.mubr.f32.mxu0 0.0
      %890 = vmatmul.mubr.f32.gmra.mrb[0].mxu0 %v823
      %v891 = vpop.f32.mrb[0].mxu0
      %v892 = vadd.f32 0.0, %v891
      %v893 = vpop.f32.mrb[0].mxu0
      %894 = vdwg.mxu0
      %895 = vrot.lane.b32.xlu0 %v724, 112
      %v896 = vpop.permute.xlu0 %895
      %897 = vrot.lane.b32.xlu0 %v724, 80
      %v898 = vpop.permute.xlu0 %897
      %v899 = vsel %vm730, %v896, 0
      %v901 = vsel %vm730, %v898, 0
      %903 = vmatprep.subr.mxu0 0.0
      %904 = vmatpush1.xpose.msra.mxu0 %v901
      %905 = vmatprep.subr.mxu0 0.0
      %906 = vmatpush1.xpose.msra.mxu0 0.0
      %907 = vmatprep.subr.mxu0 0.0
      %908 = vmatpush1.xpose.msra.mxu0 0.0
      %909 = vmatprep.subr.mxu0 0.0
      %910 = vmatpush1.xpose.msra.mxu0 0.0
      %911 = vmatprep.subr.mxu0 0.0
      %912 = vmatpush1.xpose.msra.mxu0 0.0
      %913 = vmatprep.subr.mxu0 0.0
      %914 = vmatpush1.xpose.msra.mxu0 0.0
      %915 = vmatprep.subr.mxu0 0.0
      %916 = vmatpush1.xpose.msra.mxu0 0.0
      %917 = vmatprep.subr.mxu0 0.0
      %918 = vmatpush1.xpose.msra.mxu0 0.0
      %919 = vmatprep.subr.mxu0 0.0
      %920 = vmatpush1.xpose.msra.mxu0 0.0
      %921 = vmatprep.subr.mxu0 0.0
      %922 = vmatpush1.xpose.msra.mxu0 0.0
      %923 = vmatprep.subr.mxu0 0.0
      %924 = vmatpush1.xpose.msra.mxu0 0.0
      %925 = vmatprep.subr.mxu0 0.0
      %926 = vmatpush1.xpose.msra.mxu0 0.0
      %927 = vmatprep.subr.mxu0 0.0
      %928 = vmatpush1.xpose.msra.mxu0 0.0
      %929 = vmatprep.subr.mxu0 0.0
      %930 = vmatpush1.xpose.msra.mxu0 0.0
      %931 = vmatprep.subr.mxu0 0.0
      %932 = vmatpush1.xpose.msra.mxu0 0.0
      %933 = vmatprep.subr.mxu0 0.0
      %934 = vmatpush1.xpose.msra.mxu0 0.0
      %935 = vmatprep.subr.mxu0 0.0
      %936 = vmatpush1.xpose.msra.mxu0 0.0
      %937 = vmatprep.subr.mxu0 0.0
      %938 = vmatpush1.xpose.msra.mxu0 0.0
      %939 = vmatprep.subr.mxu0 0.0
      %940 = vmatpush1.xpose.msra.mxu0 0.0
      %941 = vmatprep.subr.mxu0 0.0
      %942 = vmatpush1.xpose.msra.mxu0 0.0
      %943 = vmatprep.subr.mxu0 0.0
      %944 = vmatpush1.xpose.msra.mxu0 0.0
      %945 = vmatprep.subr.mxu0 0.0
      %946 = vmatpush1.xpose.msra.mxu0 0.0
      %947 = vmatprep.subr.mxu0 0.0
      %948 = vmatpush1.xpose.msra.mxu0 0.0
      %949 = vmatprep.subr.mxu0 0.0
      %950 = vmatpush1.xpose.msra.mxu0 0.0
      %951 = vmatprep.subr.mxu0 0.0
      %952 = vmatpush1.xpose.msra.mxu0 0.0
      %953 = vmatprep.subr.mxu0 0.0
      %954 = vmatpush1.xpose.msra.mxu0 0.0
      %955 = vmatprep.subr.mxu0 0.0
      %956 = vmatpush1.xpose.msra.mxu0 0.0
      %957 = vmatprep.subr.mxu0 0.0
      %958 = vmatpush1.xpose.msra.mxu0 0.0
      %959 = vmatprep.subr.mxu0 0.0
      %960 = vmatpush1.xpose.msra.mxu0 0.0
      %961 = vmatprep.subr.mxu0 0.0
      %962 = vmatpush1.xpose.msra.mxu0 0.0
      %963 = vmatprep.subr.mxu0 0.0
      %964 = vmatpush1.xpose.msra.mxu0 0.0
      %965 = vmatprep.subr.mxu0 0.0
      %966 = vmatpush1.xpose.msra.mxu0 0.0
      %967 = vmatprep.mubr.f32.mxu0 0.0
      %968 = vmatmul.mubr.f32.gmra.mrb[0].mxu0 %v899
      %v969 = vpop.f32.mrb[0].mxu0
      %v970 = vadd.f32 0.0, %v969
      %v971 = vpop.f32.mrb[0].mxu0
      %972 = vdwg.mxu0
      %v973 = vmul.f32 %v970, 0.25
      %v974 = vadd.f32 %v973, %v610
      %v975 = vsel %vm807, %v974, -inf
      %976 = vmax.xlane.f32.xlu0 %v975
      %v977 = vpop.xlane.xlu0 %976
      %v978 = vsub.f32 %v974, %v977
      %v979 = vmul.f32 %v978, 1.442695
      %v980 = vpow.pop %v979
      %v981 = vsel %vm807, %v980, 0.0
      %982 = vadd.xlane.f32.xlu0 %v981
      %v983 = vpop.xlane.xlu0 %982
      %v984 = vrcp.pop %v983
      %v985 = vmul.f32 %v980, %v984
      %986 = vrot.lane.b32.xlu0 %v724, 48
      %v987 = vpop.permute.xlu0 %986
      %v990 = vsel %vm807, %v985, 0
      %992 = vmatprep.subr.mxu0 0.0
      %993 = vmatpush1.msra.mxu0 %v987
      %994 = vmatprep.subr.mxu0 0.0
      %995 = vmatpush1.msra.mxu0 0.0
      %996 = vmatprep.subr.mxu0 0.0
      %997 = vmatpush1.msra.mxu0 0.0
      %998 = vmatprep.subr.mxu0 0.0
      %999 = vmatpush1.msra.mxu0 0.0
      %1000 = vmatprep.subr.mxu0 0.0
      %1001 = vmatpush1.msra.mxu0 0.0
      %1002 = vmatprep.subr.mxu0 0.0
      %1003 = vmatpush1.msra.mxu0 0.0
      %1004 = vmatprep.subr.mxu0 0.0
      %1005 = vmatpush1.msra.mxu0 0.0
      %1006 = vmatprep.subr.mxu0 0.0
      %1007 = vmatpush1.msra.mxu0 0.0
      %1008 = vmatprep.subr.mxu0 0.0
      %1009 = vmatpush1.msra.mxu0 0.0
      %1010 = vmatprep.subr.mxu0 0.0
      %1011 = vmatpush1.msra.mxu0 0.0
      %1012 = vmatprep.subr.mxu0 0.0
      %1013 = vmatpush1.msra.mxu0 0.0
      %1014 = vmatprep.subr.mxu0 0.0
      %1015 = vmatpush1.msra.mxu0 0.0
      %1016 = vmatprep.subr.mxu0 0.0
      %1017 = vmatpush1.msra.mxu0 0.0
      %1018 = vmatprep.subr.mxu0 0.0
      %1019 = vmatpush1.msra.mxu0 0.0
      %1020 = vmatprep.subr.mxu0 0.0
      %1021 = vmatpush1.msra.mxu0 0.0
      %1022 = vmatprep.subr.mxu0 0.0
      %1023 = vmatpush1.msra.mxu0 0.0
      %1024 = vmatprep.subr.mxu0 0.0
      %1025 = vmatpush1.msra.mxu0 0.0
      %1026 = vmatprep.subr.mxu0 0.0
      %1027 = vmatpush1.msra.mxu0 0.0
      %1028 = vmatprep.subr.mxu0 0.0
      %1029 = vmatpush1.msra.mxu0 0.0
      %1030 = vmatprep.subr.mxu0 0.0
      %1031 = vmatpush1.msra.mxu0 0.0
      %1032 = vmatprep.subr.mxu0 0.0
      %1033 = vmatpush1.msra.mxu0 0.0
      %1034 = vmatprep.subr.mxu0 0.0
      %1035 = vmatpush1.msra.mxu0 0.0
      %1036 = vmatprep.subr.mxu0 0.0
      %1037 = vmatpush1.msra.mxu0 0.0
      %1038 = vmatprep.subr.mxu0 0.0
      %1039 = vmatpush1.msra.mxu0 0.0
      %1040 = vmatprep.subr.mxu0 0.0
      %1041 = vmatpush1.msra.mxu0 0.0
      %1042 = vmatprep.subr.mxu0 0.0
      %1043 = vmatpush1.msra.mxu0 0.0
      %1044 = vmatprep.subr.mxu0 0.0
      %1045 = vmatpush1.msra.mxu0 0.0
      %1046 = vmatprep.subr.mxu0 0.0
      %1047 = vmatpush1.msra.mxu0 0.0
      %1048 = vmatprep.subr.mxu0 0.0
      %1049 = vmatpush1.msra.mxu0 0.0
      %1050 = vmatprep.subr.mxu0 0.0
      %1051 = vmatpush1.msra.mxu0 0.0
      %1052 = vmatprep.subr.mxu0 0.0
      %1053 = vmatpush1.msra.mxu0 0.0
      %1054 = vmatprep.subr.mxu0 0.0
      %1055 = vmatpush1.msra.mxu0 0.0
      %1056 = vmatprep.mubr.f32.mxu0 0.0
      %1057 = vmatmul.mubr.f32.gmra.mrb[0].mxu0 %v990
      %v1058 = vpop.f32.mrb[0].mxu0
      %v1059 = vadd.f32 0.0, %v1058
      %v1060 = vpop.f32.mrb[0].mxu0
      %1061 = vdwg.mxu0
      %1063 = vrot.lane.b32.xlu0 %v1059, 16
      %v1064 = vpop.permute.xlu0 %1063
      %v1066 = vsel %vm730, %v892, %v1064
      %v1067 = vld [vmem:[%s6] sm:$0xff]
      %v1068 = vld [vmem:[%s6 + $0x8] sm:$0xff]
      %v1069 = vld [vmem:[%s6 + $0x10] sm:$0xff]
      %v1070 = vld [vmem:[%s6 + $0x18] sm:$0xff]
      %v1071 = vld [vmem:[%s7] sm:$0x1]
      %v1073 = vlaneseq
      %v1074 = vshrl.u32 %v1073, 7
      %v1075 = vsub.s32 0, %v1074
      %v1076 = vrot.slane %v1071, %v1075
      %v1079 = vsel %vm614, %v1066, 0
      %1081 = vmatprep.subr.mxu0 0.0
      %1082 = vmatpush1.msra.mxu0 %v1067
      %1083 = vmatprep.subr.mxu0 0.0
      %1084 = vmatpush1.msra.mxu0 %v1068
      %1085 = vmatprep.subr.mxu0 0.0
      %1086 = vmatpush1.msra.mxu0 %v1069
      %1087 = vmatprep.subr.mxu0 0.0
      %1088 = vmatpush1.msra.mxu0 %v1070
      %1089 = vmatprep.subr.mxu0 0.0
      %1090 = vmatpush1.msra.mxu0 0.0
      %1091 = vmatprep.subr.mxu0 0.0
      %1092 = vmatpush1.msra.mxu0 0.0
      %1093 = vmatprep.subr.mxu0 0.0
      %1094 = vmatpush1.msra.mxu0 0.0
      %1095 = vmatprep.subr.mxu0 0.0
      %1096 = vmatpush1.msra.mxu0 0.0
      %1097 = vmatprep.subr.mxu0 0.0
      %1098 = vmatpush1.msra.mxu0 0.0
      %1099 = vmatprep.subr.mxu0 0.0
      %1100 = vmatpush1.msra.mxu0 0.0
      %1101 = vmatprep.subr.mxu0 0.0
      %1102 = vmatpush1.msra.mxu0 0.0
      %1103 = vmatprep.subr.mxu0 0.0
      %1104 = vmatpush1.msra.mxu0 0.0
      %1105 = vmatprep.subr.mxu0 0.0
      %1106 = vmatpush1.msra.mxu0 0.0
      %1107 = vmatprep.subr.mxu0 0.0
      %1108 = vmatpush1.msra.mxu0 0.0
      %1109 = vmatprep.subr.mxu0 0.0
      %1110 = vmatpush1.msra.mxu0 0.0
      %1111 = vmatprep.subr.mxu0 0.0
      %1112 = vmatpush1.msra.mxu0 0.0
      %1113 = vmatprep.subr.mxu0 0.0
      %1114 = vmatpush1.msra.mxu0 0.0
      %1115 = vmatprep.subr.mxu0 0.0
      %1116 = vmatpush1.msra.mxu0 0.0
      %1117 = vmatprep.subr.mxu0 0.0
      %1118 = vmatpush1.msra.mxu0 0.0
      %1119 = vmatprep.subr.mxu0 0.0
      %1120 = vmatpush1.msra.mxu0 0.0
      %1121 = vmatprep.subr.mxu0 0.0
      %1122 = vmatpush1.msra.mxu0 0.0
      %1123 = vmatprep.subr.mxu0 0.0
      %1124 = vmatpush1.msra.mxu0 0.0
      %1125 = vmatprep.subr.mxu0 0.0
      %1126 = vmatpush1.msra.mxu0 0.0
      %1127 = vmatprep.subr.mxu0 0.0
      %1128 = vmatpush1.msra.mxu0 0.0
      %1129 = vmatprep.subr.mxu0 0.0
      %1130 = vmatpush1.msra.mxu0 0.0
      %1131 = vmatprep.subr.mxu0 0.0
      %1132 = vmatpush1.msra.mxu0 0.0
      %1133 = vmatprep.subr.mxu0 0.0
      %1134 = vmatpush1.msra.mxu0 0.0
      %1135 = vmatprep.subr.mxu0 0.0
      %1136 = vmatpush1.msra.mxu0 0.0
      %1137 = vmatprep.subr.mxu0 0.0
      %1138 = vmatpush1.msra.mxu0 0.0
      %1139 = vmatprep.subr.mxu0 0.0
      %1140 = vmatpush1.msra.mxu0 0.0
      %1141 = vmatprep.subr.mxu0 0.0
      %1142 = vmatpush1.msra.mxu0 0.0
      %1143 = vmatprep.subr.mxu0 0.0
      %1144 = vmatpush1.msra.mxu0 0.0
      %1145 = vmatprep.mubr.f32.mxu0 0.0
      %1146 = vmatmul.mubr.f32.gmra.mrb[0].mxu0 %v1079
      %v1147 = vpop.f32.mrb[0].mxu0
      %v1148 = vadd.f32 %v1076, %v1147
      %v1149 = vpop.f32.mrb[0].mxu0
      %1150 = vdwg.mxu0
      %v1151 = vadd.f32 %v642, %v1148
      %v1152 = vld [vmem:[%s8] sm:$0x1]
      %v1153 = vld [vmem:[%s9] sm:$0x1]
      %v1154 = vsel %vm614, %v1151, 0.0
      %1155 = vadd.xlane.f32.xlu0 %v1154
      %v1156 = vpop.xlane.xlu0 %1155
      %v1157 = vmul.f32 %v1156, %v618
      %v1158 = vsub.f32 %v1151, %v1157
      %v1159 = vmul.f32 %v1158, %v1158
      %v1160 = vsel %vm614, %v1159, 0.0
      %1161 = vadd.xlane.f32.xlu0 %v1160
      %v1162 = vpop.xlane.xlu0 %1161
      %v1163 = vmul.f32 %v1162, %v618
      %v1164 = vadd.f32 %v1163, 1e-12
      %v1165 = vrsqrt.pop %v1164
      %v1166 = vmul.f32 %v1158, %v1165
      %v1168 = vlaneseq
      %v1169 = vshrl.u32 %v1168, 7
      %v1170 = vsub.s32 0, %v1169
      %v1171 = vrot.slane %v1152, %v1170
      %v1173 = vmul.f32 %v1166, %v1171
      %v1175 = vlaneseq
      %v1176 = vshrl.u32 %v1175, 7
      %v1177 = vsub.s32 0, %v1176
      %v1178 = vrot.slane %v1153, %v1177
      %v1180 = vadd.f32 %v1173, %v1178
      %v1181 = vld [vmem:[%s10] sm:$0xff]
      %v1182 = vld [vmem:[%s10 + $0x8] sm:$0xff]
      %v1183 = vld [vmem:[%s10 + $0x10] sm:$0xff]
      %v1184 = vld [vmem:[%s10 + $0x18] sm:$0xff]
      %v1185 = vld [vmem:[%s11] sm:$0x1]
      %v1187 = vlaneseq
      %v1188 = vshrl.u32 %v1187, 7
      %v1189 = vsub.s32 0, %v1188
      %v1190 = vrot.slane %v1185, %v1189
      %v1193 = vsel %vm614, %v1180, 0
      %1195 = vmatprep.subr.mxu0 0.0
      %1196 = vmatpush1.msra.mxu0 %v1181
      %1197 = vmatprep.subr.mxu0 0.0
      %1198 = vmatpush1.msra.mxu0 %v1182
      %1199 = vmatprep.subr.mxu0 0.0
      %1200 = vmatpush1.msra.mxu0 %v1183
      %1201 = vmatprep.subr.mxu0 0.0
      %1202 = vmatpush1.msra.mxu0 %v1184
      %1203 = vmatprep.subr.mxu0 0.0
      %1204 = vmatpush1.msra.mxu0 0.0
      %1205 = vmatprep.subr.mxu0 0.0
      %1206 = vmatpush1.msra.mxu0 0.0
      %1207 = vmatprep.subr.mxu0 0.0
      %1208 = vmatpush1.msra.mxu0 0.0
      %1209 = vmatprep.subr.mxu0 0.0
      %1210 = vmatpush1.msra.mxu0 0.0
      %1211 = vmatprep.subr.mxu0 0.0
      %1212 = vmatpush1.msra.mxu0 0.0
      %1213 = vmatprep.subr.mxu0 0.0
      %1214 = vmatpush1.msra.mxu0 0.0
      %1215 = vmatprep.subr.mxu0 0.0
      %1216 = vmatpush1.msra.mxu0 0.0
      %1217 = vmatprep.subr.mxu0 0.0
      %1218 = vmatpush1.msra.mxu0 0.0
      %1219 = vmatprep.subr.mxu0 0.0
      %1220 = vmatpush1.msra.mxu0 0.0
      %1221 = vmatprep.subr.mxu0 0.0
      %1222 = vmatpush1.msra.mxu0 0.0
      %1223 = vmatprep.subr.mxu0 0.0
      %1224 = vmatpush1.msra.mxu0 0.0
      %1225 = vmatprep.subr.mxu0 0.0
      %1226 = vmatpush1.msra.mxu0 0.0
      %1227 = vmatprep.subr.mxu0 0.0
      %1228 = vmatpush1.msra.mxu0 0.0
      %1229 = vmatprep.subr.mxu0 0.0
      %1230 = vmatpush1.msra.mxu0 0.0
      %1231 = vmatprep.subr.mxu0 0.0
      %1232 = vmatpush1.msra.mxu0 0.0
      %1233 = vmatprep.subr.mxu0 0.0
      %1234 = vmatpush1.msra.mxu0 0.0
      %1235 = vmatprep.subr.mxu0 0.0
      %1236 = vmatpush1.msra.mxu0 0.0
      %1237 = vmatprep.subr.mxu0 0.0
      %1238 = vmatpush1.msra.mxu0 0.0
      %1239 = vmatprep.subr.mxu0 0.0
      %1240 = vmatpush1.msra.mxu0 0.0
      %1241 = vmatprep.subr.mxu0 0.0
      %1242 = vmatpush1.msra.mxu0 0.0
      %1243 = vmatprep.subr.mxu0 0.0
      %1244 = vmatpush1.msra.mxu0 0.0
      %1245 = vmatprep.subr.mxu0 0.0
      %1246 = vmatpush1.msra.mxu0 0.0
      %1247 = vmatprep.subr.mxu0 0.0
      %1248 = vmatpush1.msra.mxu0 0.0
      %1249 = vmatprep.subr.mxu0 0.0
      %1250 = vmatpush1.msra.mxu0 0.0
      %1251 = vmatprep.subr.mxu0 0.0
      %1252 = vmatpush1.msra.mxu0 0.0
      %1253 = vmatprep.subr.mxu0 0.0
      %1254 = vmatpush1.msra.mxu0 0.0
      %1255 = vmatprep.subr.mxu0 0.0
      %1256 = vmatpush1.msra.mxu0 0.0
      %1257 = vmatprep.subr.mxu0 0.0
      %1258 = vmatpush1.msra.mxu0 0.0
      %1259 = vmatprep.mubr.f32.mxu0 0.0
      %1260 = vmatmul.mubr.f32.gmra.mrb[0].mxu0 %v1193
      %v1261 = vpop.f32.mrb[0].mxu0
      %v1262 = vadd.f32 %v1190, %v1261
      %v1263 = vpop.f32.mrb[0].mxu0
      %1264 = vdwg.mxu0
      %v1265 = vmul.f32 %v1262, %v1262
      %v1266 = vmul.f32 %v1262, %v1265
      %v1267 = vmul.f32 %v1266, 0.044715
      %v1268 = vadd.f32 %v1262, %v1267
      %v1269 = vmul.f32 %v1268, 0.7978846
      %v1270 = vtanh.pop %v1269
      %v1271 = vadd.f32 %v1270, 1.0
      %v1272 = vmul.f32 %v1271, 0.5
      %v1273 = vmul.f32 %v1262, %v1272
      %v1274 = vld [vmem:[%s12] sm:$0xff]
      %v1275 = vld [vmem:[%s12 + $0x8] sm:$0xff]
      %v1276 = vld [vmem:[%s12 + $0x10] sm:$0xff]
      %v1277 = vld [vmem:[%s12 + $0x18] sm:$0xff]
      %v1278 = vld [vmem:[%s12 + $0x20] sm:$0xff]
      %v1279 = vld [vmem:[%s12 + $0x28] sm:$0xff]
      %v1280 = vld [vmem:[%s12 + $0x30] sm:$0xff]
      %v1281 = vld [vmem:[%s12 + $0x38] sm:$0xff]
      %v1282 = vld [vmem:[%s13] sm:$0x1]
      %v1284 = vlaneseq
      %v1285 = vshrl.u32 %v1284, 7
      %v1286 = vsub.s32 0, %v1285
      %v1287 = vrot.slane %v1282, %v1286
      %vm1289 = vcmask 523264
      %v1291 = vsel %vm1289, %v1273, 0
      %1293 = vmatprep.subr.mxu0 0.0
      %1294 = vmatpush1.msra.mxu0 %v1274
      %1295 = vmatprep.subr.mxu0 0.0
      %1296 = vmatpush1.msra.mxu0 %v1275
      %1297 = vmatprep.subr.mxu0 0.0
      %1298 = vmatpush1.msra.mxu0 %v1276
      %1299 = vmatprep.subr.mxu0 0.0
      %1300 = vmatpush1.msra.mxu0 %v1277
      %1301 = vmatprep.subr.mxu0 0.0
      %1302 = vmatpush1.msra.mxu0 %v1278
      %1303 = vmatprep.subr.mxu0 0.0
      %1304 = vmatpush1.msra.mxu0 %v1279
      %1305 = vmatprep.subr.mxu0 0.0
      %1306 = vmatpush1.msra.mxu0 %v1280
      %1307 = vmatprep.subr.mxu0 0.0
      %1308 = vmatpush1.msra.mxu0 %v1281
      %1309 = vmatprep.subr.mxu0 0.0
      %1310 = vmatpush1.msra.mxu0 0.0
      %1311 = vmatprep.subr.mxu0 0.0
      %1312 = vmatpush1.msra.mxu0 0.0
      %1313 = vmatprep.subr.mxu0 0.0
      %1314 = vmatpush1.msra.mxu0 0.0
      %1315 = vmatprep.subr.mxu0 0.0
      %1316 = vmatpush1.msra.mxu0 0.0
      %1317 = vmatprep.subr.mxu0 0.0
      %1318 = vmatpush1.msra.mxu0 0.0
      %1319 = vmatprep.subr.mxu0 0.0
      %1320 = vmatpush1.msra.mxu0 0.0
      %1321 = vmatprep.subr.mxu0 0.0
      %1322 = vmatpush1.msra.mxu0 0.0
      %1323 = vmatprep.subr.mxu0 0.0
      %1324 = vmatpush1.msra.mxu0 0.0
      %1325 = vmatprep.subr.mxu0 0.0
      %1326 = vmatpush1.msra.mxu0 0.0
      %1327 = vmatprep.subr.mxu0 0.0
      %1328 = vmatpush1.msra.mxu0 0.0
      %1329 = vmatprep.subr.mxu0 0.0
      %1330 = vmatpush1.msra.mxu0 0.0
      %1331 = vmatprep.subr.mxu0 0.0
      %1332 = vmatpush1.msra.mxu0 0.0
      %1333 = vmatprep.subr.mxu0 0.0
      %1334 = vmatpush1.msra.mxu0 0.0
      %1335 = vmatprep.subr.mxu0 0.0
      %1336 = vmatpush1.msra.mxu0 0.0
      %1337 = vmatprep.subr.mxu0 0.0
      %1338 = vmatpush1.msra.mxu0 0.0
      %1339 = vmatprep.subr.mxu0 0.0
      %1340 = vmatpush1.msra.mxu0 0.0
      %1341 = vmatprep.subr.mxu0 0.0
      %1342 = vmatpush1.msra.mxu0 0.0
      %1343 = vmatprep.subr.mxu0 0.0
      %1344 = vmatpush1.msra.mxu0 0.0
      %1345 = vmatprep.subr.mxu0 0.0
      %1346 = vmatpush1.msra.mxu0 0.0
      %1347 = vmatprep.subr.mxu0 0.0
      %1348 = vmatpush1.msra.mxu0 0.0
      %1349 = vmatprep.subr.mxu0 0.0
      %1350 = vmatpush1.msra.mxu0 0.0
      %1351 = vmatprep.subr.mxu0 0.0
      %1352 = vmatpush1.msra.mxu0 0.0
      %1353 = vmatprep.subr.mxu0 0.0
      %1354 = vmatpush1.msra.mxu0 0.0
      %1355 = vmatprep.subr.mxu0 0.0
      %1356 = vmatpush1.msra.mxu0 0.0
      %1357 = vmatprep.mubr.f32.mxu0 0.0
      %1358 = vmatmul.mubr.f32.gmra.mrb[0].mxu0 %v1291
      %v1359 = vpop.f32.mrb[0].mxu0
      %v1360 = vadd.f32 %v1287, %v1359
      %v1361 = vpop.f32.mrb[0].mxu0
      %1362 = vdwg.mxu0
      %v1363 = vadd.f32 %v1180, %v1360
      %v1364 = vld [vmem:[%s14] sm:$0x1]
      %v1365 = vld [vmem:[%s15] sm:$0x1]
      %v1366 = vsel %vm614, %v1363, 0.0
      %1367 = vadd.xlane.f32.xlu0 %v1366
      %v1368 = vpop.xlane.xlu0 %1367
      %v1369 = vmul.f32 %v1368, %v618
      %v1370 = vsub.f32 %v1363, %v1369
      %v1371 = vmul.f32 %v1370, %v1370
      %v1372 = vsel %vm614, %v1371, 0.0
      %1373 = vadd.xlane.f32.xlu0 %v1372
      %v1374 = vpop.xlane.xlu0 %1373
      %v1375 = vmul.f32 %v1374, %v618
      %v1376 = vadd.f32 %v1375, 1e-12
      %v1377 = vrsqrt.pop %v1376
      %v1378 = vmul.f32 %v1370, %v1377
      %v1380 = vlaneseq
      %v1381 = vshrl.u32 %v1380, 7
      %v1382 = vsub.s32 0, %v1381
      %v1383 = vrot.slane %v1364, %v1382
      %v1385 = vmul.f32 %v1378, %v1383
      %v1387 = vlaneseq
      %v1388 = vshrl.u32 %v1387, 7
      %v1389 = vsub.s32 0, %v1388
      %v1390 = vrot.slane %v1365, %v1389
      %v1392 = vadd.f32 %v1385, %v1390
      %v1393 = vld [vmem:[%s16] sm:$0xff]
      %v1394 = vld [vmem:[%s16 + $0x8] sm:$0xff]
      %v1395 = vld [vmem:[%s16 + $0x10] sm:$0xff]
      %v1396 = vld [vmem:[%s16 + $0x18] sm:$0xff]
      %v1397 = vld [vmem:[%s17] sm:$0x1]
      %v1399 = vsel %vm614, %v1392, 0
      %1401 = vmatprep.subr.mxu0 0.0
      %1402 = vmatpush1.msra.mxu0 %v1393
      %1403 = vmatprep.subr.mxu0 0.0
      %1404 = vmatpush1.msra.mxu0 %v1394
      %1405 = vmatprep.subr.mxu0 0.0
      %1406 = vmatpush1.msra.mxu0 %v1395
      %1407 = vmatprep.subr.mxu0 0.0
      %1408 = vmatpush1.msra.mxu0 %v1396
      %1409 = vmatprep.subr.mxu0 0.0
      %1410 = vmatpush1.msra.mxu0 0.0
      %1411 = vmatprep.subr.mxu0 0.0
      %1412 = vmatpush1.msra.mxu0 0.0
      %1413 = vmatprep.subr.mxu0 0.0
      %1414 = vmatpush1.msra.mxu0 0.0
      %1415 = vmatprep.subr.mxu0 0.0
      %1416 = vmatpush1.msra.mxu0 0.0
      %1417 = vmatprep.subr.mxu0 0.0
      %1418 = vmatpush1.msra.mxu0 0.0
      %1419 = vmatprep.subr.mxu0 0.0
      %1420 = vmatpush1.msra.mxu0 0.0
      %1421 = vmatprep.subr.mxu0 0.0
      %1422 = vmatpush1.msra.mxu0 0.0
      %1423 = vmatprep.subr.mxu0 0.0
      %1424 = vmatpush1.msra.mxu0 0.0
      %1425 = vmatprep.subr.mxu0 0.0
      %1426 = vmatpush1.msra.mxu0 0.0
      %1427 = vmatprep.subr.mxu0 0.0
      %1428 = vmatpush1.msra.mxu0 0.0
      %1429 = vmatprep.subr.mxu0 0.0
      %1430 = vmatpush1.msra.mxu0 0.0
      %1431 = vmatprep.subr.mxu0 0.0
      %1432 = vmatpush1.msra.mxu0 0.0
      %1433 = vmatprep.subr.mxu0 0.0
      %1434 = vmatpush1.msra.mxu0 0.0
      %1435 = vmatprep.subr.mxu0 0.0
      %1436 = vmatpush1.msra.mxu0 0.0
      %1437 = vmatprep.subr.mxu0 0.0
      %1438 = vmatpush1.msra.mxu0 0.0
      %1439 = vmatprep.subr.mxu0 0.0
      %1440 = vmatpush1.msra.mxu0 0.0
      %1441 = vmatprep.subr.mxu0 0.0
      %1442 = vmatpush1.msra.mxu0 0.0
      %1443 = vmatprep.subr.mxu0 0.0
      %1444 = vmatpush1.msra.mxu0 0.0
      %1445 = vmatprep.subr.mxu0 0.0
      %1446 = vmatpush1.msra.mxu0 0.0
      %1447 = vmatprep.subr.mxu0 0.0
      %1448 = vmatpush1.msra.mxu0 0.0
      %1449 = vmatprep.subr.mxu0 0.0
      %1450 = vmatpush1.msra.mxu0 0.0
      %1451 = vmatprep.subr.mxu0 0.0
      %1452 = vmatpush1.msra.mxu0 0.0
      %1453 = vmatprep.subr.mxu0 0.0
      %1454 = vmatpush1.msra.mxu0 0.0
      %1455 = vmatprep.subr.mxu0 0.0
      %1456 = vmatpush1.msra.mxu0 0.0
      %1457 = vmatprep.subr.mxu0 0.0
      %1458 = vmatpush1.msra.mxu0 0.0
      %1459 = vmatprep.subr.mxu0 0.0
      %1460 = vmatpush1.msra.mxu0 0.0
      %1461 = vmatprep.subr.mxu0 0.0
      %1462 = vmatpush1.msra.mxu0 0.0
      %1463 = vmatprep.subr.mxu0 0.0
      %1464 = vmatpush1.msra.mxu0 0.0
      %1465 = vmatprep.mubr.f32.mxu0 0.0
      %1466 = vmatmul.mubr.f32.gmra.mrb[0].mxu0 %v1399
      %v1467 = vpop.f32.mrb[0].mxu0
      %v1468 = vadd.f32 %v1397, %v1467
      %v1469 = vpop.f32.mrb[0].mxu0
      %1470 = vdwg.mxu0
      %v1471 = vtanh.pop %v1468
      %v1472 = vld [vmem:[%s18] sm:$0xff]
      %v1473 = vld [vmem:[%s18 + $0x8] sm:$0xff]
      %v1474 = vld [vmem:[%s18 + $0x10] sm:$0xff]
      %v1475 = vld [vmem:[%s18 + $0x18] sm:$0xff]
      %v1476 = vld [vmem:[%s19] sm:$0x1]
      %v1478 = vsel %vm614, %v1471, 0
      %1480 = vmatprep.subr.mxu0 0.0
      %1481 = vmatpush1.msra.mxu0 %v1472
      %1482 = vmatprep.subr.mxu0 0.0
      %1483 = vmatpush1.msra.mxu0 %v1473
      %1484 = vmatprep.subr.mxu0 0.0
      %1485 = vmatpush1.msra.mxu0 %v1474
      %1486 = vmatprep.subr.mxu0 0.0
      %1487 = vmatpush1.msra.mxu0 %v1475
      %1488 = vmatprep.subr.mxu0 0.0
      %1489 = vmatpush1.msra.mxu0 0.0
      %1490 = vmatprep.subr.mxu0 0.0
      %1491 = vmatpush1.msra.mxu0 0.0
      %1492 = vmatprep.subr.mxu0 0.0
      %1493 = vmatpush1.msra.mxu0 0.0
      %1494 = vmatprep.subr.mxu0 0.0
      %1495 = vmatpush1.msra.mxu0 0.0
      %1496 = vmatprep.subr.mxu0 0.0
      %1497 = vmatpush1.msra.mxu0 0.0
      %1498 = vmatprep.subr.mxu0 0.0
      %1499 = vmatpush1.msra.mxu0 0.0
      %1500 = vmatprep.subr.mxu0 0.0
      %1501 = vmatpush1.msra.mxu0 0.0
      %1502 = vmatprep.subr.mxu0 0.0
      %1503 = vmatpush1.msra.mxu0 0.0
      %1504 = vmatprep.subr.mxu0 0.0
      %1505 = vmatpush1.msra.mxu0 0.0
      %1506 = vmatprep.subr.mxu0 0.0
      %1507 = vmatpush1.msra.mxu0 0.0
      %1508 = vmatprep.subr.mxu0 0.0
      %1509 = vmatpush1.msra.mxu0 0.0
      %1510 = vmatprep.subr.mxu0 0.0
      %1511 = vmatpush1.msra.mxu0 0.0
      %1512 = vmatprep.subr.mxu0 0.0
      %1513 = vmatpush1.msra.mxu0 0.0
      %1514 = vmatprep.subr.mxu0 0.0
      %1515 = vmatpush1.msra.mxu0 0.0
      %1516 = vmatprep.subr.mxu0 0.0
      %1517 = vmatpush1.msra.mxu0 0.0
      %1518 = vmatprep.subr.mxu0 0.0
      %1519 = vmatpush1.msra.mxu0 0.0
      %1520 = vmatprep.subr.mxu0 0.0
      %1521 = vmatpush1.msra.mxu0 0.0
      %1522 = vmatprep.subr.mxu0 0.0
      %1523 = vmatpush1.msra.mxu0 0.0
      %1524 = vmatprep.subr.mxu0 0.0
      %1525 = vmatpush1.msra.mxu0 0.0
      %1526 = vmatprep.subr.mxu0 0.0
      %1527 = vmatpush1.msra.mxu0 0.0
      %1528 = vmatprep.subr.mxu0 0.0
      %1529 = vmatpush1.msra.mxu0 0.0
      %1530 = vmatprep.subr.mxu0 0.0
      %1531 = vmatpush1.msra.mxu0 0.0
      %1532 = vmatprep.subr.mxu0 0.0
      %1533 = vmatpush1.msra.mxu0 0.0
      %1534 = vmatprep.subr.mxu0 0.0
      %1535 = vmatpush1.msra.mxu0 0.0
      %1536 = vmatprep.subr.mxu0 0.0
      %1537 = vmatpush1.msra.mxu0 0.0
      %1538 = vmatprep.subr.mxu0 0.0
      %1539 = vmatpush1.msra.mxu0 0.0
      %1540 = vmatprep.subr.mxu0 0.0
      %1541 = vmatpush1.msra.mxu0 0.0
      %1542 = vmatprep.subr.mxu0 0.0
      %1543 = vmatpush1.msra.mxu0 0.0
      %1544 = vmatprep.mubr.f32.mxu0 0.0
      %1545 = vmatmul.mubr.f32.gmra.mrb[0].mxu0 %v1478
      %v1546 = vpop.f32.mrb[0].mxu0
      %v1547 = vadd.f32 %v1476, %v1546
      %v1548 = vpop.f32.mrb[0].mxu0
      %1549 = vdwg.mxu0
      %v1550 = vlaneseq
      %v1551 = vshrl.u32 %v1550, 7
      %v1552 = vsub.s32 0, %v1551
      %v1553 = vrot.slane %v1547, %v1552
      %1554 = vst [vmem:[%s604] sm:$0xff] %v1553
      %p1555 = scmp.lt.s32.totalorder %s37, 1
      %s1556 = scalar_select %p1555, %s37, 1
      %s1557 = smul.addr %s1556, 8
      %s1558 = scalar_lea.vmem %s20, %s1557
      // Predicated region
      $region97: #{bert_classifier_forward.1} parent=95 // pred_check
        %p1559 = pneg %p459
      $region98: #{bert_classifier_forward.1} parent=95 // pred_check_branch
        %1561 = sbr.rel (%p1559) target = $region100
      $region99: #{bert_classifier_forward.1} parent=95 // pred_region
        _
      $region100: #{bert_classifier_forward.1} parent=95 // pred_fallthru
        _
    $region96: #{bert_classifier_forward.1} parent=5 // pred_fallthru
      _
    %p1562 = scmp.le.s32.totalorder 2, %s32
    // Predicated region
    $region101: #{bert_classifier_forward.1} parent=5 // pred_check
      %p1563 = pneg %p1562
    $region102: #{bert_classifier_forward.1} parent=5 // pred_check_branch
      %1565 = sbr.rel (%p1563) target = $region104
    $region103: #{bert_classifier_forward.1} parent=5 // pred_region
      %s1566 = ssub.s32 %s32, 2
      // Predicated region
      $region105: #{bert_classifier_forward.1} parent=103 // pred_check
        %p1567 = pneg %p465
      $region106: #{bert_classifier_forward.1} parent=103 // pred_check_branch
        %1569 = sbr.rel (%p1567) target = $region108
      $region107: #{bert_classifier_forward.1} parent=103 // pred_region
        %p1570 = scmp.lt.s32.totalorder %s38, 1
        %s1571 = scalar_select %p1570, %s38, 1
        %s1572 = smul.addr %s1571, 8
        %s1573 = scalar_lea.vmem %s20, %s1572
      $region108: #{bert_classifier_forward.1} parent=103 // pred_fallthru
        _
    $region104: #{bert_classifier_forward.1} parent=5 // pred_fallthru
      _
  $region6: #{bert_classifier_forward.1} parent=0 // loop_footer
    %s36 = sadd.s32 1, %s32
  $region7: #{bert_classifier_forward.1} parent=0 // loop_footer_branch
    %31 = sbr.rel target = $region3
  $region8: #{bert_classifier_forward.1} parent=0 // loop_exit
    _

</llo_original>
